<compile_context>
chip_gen: v7x
topology: tpu7x:2x2x1
jax: 0.10.0
libtpu: 0.0.40
codegen_flags: <defaults>
</compile_context>

<pallas_src>
import jax
import jax.numpy as jnp
from jax.experimental import pallas as pl
from jax.experimental.pallas import tpu as pltpu

INPUT_SIZE = 28
HIDDEN_SIZE = 32
OUTPUT_SIZE = 10
NUM_LAYERS = 2
FC_PAD = 128  # lane-dense width for the FC output


def _make_lstm_kernel(num_layers, T, Bp, H):
    """Pallas kernel body: `num_layers` stacked LSTM layers + final Linear.

    Input sequence is flattened time-major: x2d has shape (T*Bp, I0) so each
    timestep is a sublane-aligned (Bp, I) slab (Bp == 8 == f32 sublanes).
    The g-gate columns of W_ih/W_hh and of the fused bias arrive pre-scaled by 2
    so tanh(z_g) can be recovered as 2*sigmoid(2*z_g) - 1 from the single
    full-width sigmoid pass.
    """

    def kernel(*refs):
        # refs: x2d, (w_ih_T, w_hh_T, b)*L, fc_w_T(padded), fc_b(padded), out
        x_ref = refs[0]
        w_refs = refs[1:1 + 3 * num_layers]
        fcw_ref = refs[1 + 3 * num_layers]
        fcb_ref = refs[2 + 3 * num_layers]
        out_ref = refs[3 + 3 * num_layers]

        seq = x_ref[...]                      # (T*Bp, I_0)
        h = None
        for l in range(num_layers):
            wih = w_refs[3 * l][...]          # (I_l, 4H)  (g cols pre-scaled x2)
            whh = w_refs[3 * l + 1][...]      # (H,   4H)  (g cols pre-scaled x2)
            b = w_refs[3 * l + 2][...]        # (1,   4H)  (= b_ih + b_hh, g x2)
            last = (l == num_layers - 1)

            # Hoisted input projection + bias: one MXU matmul for all T steps.
            gates_x = (jnp.dot(seq, wih, preferred_element_type=jnp.float32)
                       + b)                   # (T*Bp, 4H)

            # h0 = c0 = 0 (PyTorch passes None for the initial state).
            h = jnp.zeros((Bp, H), jnp.float32)
            c = jnp.zeros((Bp, H), jnp.float32)
            outs = []
            for t in range(T):                # fully unrolled (T is static)
                # TODO(synk): further win — hold W_hh in the MXU across the loop via
                # pltpu.matmul_push_rhs/matmul_acc_lhs/matmul_pop (perf-only).
                gates = (gates_x[t * Bp:(t + 1) * Bp, :]
                         + jnp.dot(h, whh, preferred_element_type=jnp.float32))
                # Single full 128-lane EUP pass; gate order is (i, f, g, o).
                sig = jax.nn.sigmoid(gates)               # (Bp, 4H)
                i_g = sig[:, 0 * H:1 * H]
                f_g = sig[:, 1 * H:2 * H]
                g_g = 2.0 * sig[:, 2 * H:3 * H] - 1.0     # tanh(z) = 2*sig(2z)-1
                o_g = sig[:, 3 * H:4 * H]
                c = f_g * c + i_g * g_g
                h = o_g * jnp.tanh(c)                     # quarter-width EUP pass
                if not last:                  # top layer: no sequence writeback
                    outs.append(h)
            if not last:
                seq = jnp.concatenate(outs, axis=0)       # (T*Bp, H) for next layer

        # fc(out[:, -1, :]): top-layer hidden at the last timestep.
        # fc weights/bias are lane-padded to 128 → unmasked, lane-dense store.
        out_ref[...] = (jnp.dot(h, fcw_ref[...],
                                preferred_element_type=jnp.float32)
                        + fcb_ref[...])       # (Bp, 128)

    return kernel


def rnn_forward(x, params):
    """Pallas forward. x: (B, T, INPUT_SIZE) float32 -> (B, OUTPUT_SIZE)."""
    B, T, I = x.shape
    H, O, L = HIDDEN_SIZE, OUTPUT_SIZE, NUM_LAYERS
    Bp = ((B + 7) // 8) * 8                   # pad batch to f32 sublane count

    # time-major, batch-padded, flattened to (T*Bp, I)
    x_tm = jnp.transpose(x, (1, 0, 2)).astype(jnp.float32)      # (T, B, I)
    if Bp != B:
        x_tm = jnp.pad(x_tm, ((0, 0), (0, Bp - B), (0, 0)))     # (T, Bp, I)
    x2d = x_tm.reshape(T * Bp, I)

    # Pre-scale the g-gate columns (index 2H:3H) by 2 so the kernel can use
    # tanh(z) = 2*sigmoid(2z) - 1 and skip the full-width tanh EUP pass.
    g_scale = jnp.concatenate([jnp.ones(2 * H, jnp.float32),
                               jnp.full((H,), 2.0, jnp.float32),
                               jnp.ones(H, jnp.float32)])        # (4H,)

    kernel_inputs = [x2d]
    for l in range(L):
        w_ih, w_hh, b_ih, b_hh = params["lstm"][l]
        kernel_inputs.append(
            (jnp.transpose(w_ih).astype(jnp.float32) * g_scale[None, :]))   # (I_l, 4H)
        kernel_inputs.append(
            (jnp.transpose(w_hh).astype(jnp.float32) * g_scale[None, :]))   # (H,   4H)
        kernel_inputs.append(
            ((b_ih + b_hh).astype(jnp.float32) * g_scale)[None, :])         # (1,   4H)

    fc_w, fc_b = params["fc"]
    fc_w_t = jnp.transpose(fc_w).astype(jnp.float32)                        # (H, O)
    fc_w_pad = jnp.pad(fc_w_t, ((0, 0), (0, FC_PAD - O)))                   # (H, 128)
    fc_b_pad = jnp.pad(fc_b.astype(jnp.float32), (0, FC_PAD - O))[None, :]  # (1, 128)
    kernel_inputs.append(fc_w_pad)
    kernel_inputs.append(fc_b_pad)

    kernel = _make_lstm_kernel(L, T, Bp, H)
    out_p = pl.pallas_call(
        kernel,
        out_shape=jax.ShapeDtypeStruct((Bp, FC_PAD), jnp.float32),
        in_specs=[pl.BlockSpec(memory_space=pltpu.MemorySpace.VMEM)] * len(kernel_inputs),
        out_specs=pl.BlockSpec(memory_space=pltpu.MemorySpace.VMEM),
    )(*kernel_inputs)
    return out_p[:B, :O]


def init_params(key):
    """Deterministic init matching PyTorch LSTM/Linear parameter shapes."""
    H, I, O, L = HIDDEN_SIZE, INPUT_SIZE, OUTPUT_SIZE, NUM_LAYERS
    k = 1.0 / jnp.sqrt(jnp.float32(H))
    keys = jax.random.split(key, 4 * L + 2)
    lstm = []
    for l in range(L):
        in_sz = I if l == 0 else H
        kw = keys[4 * l:4 * l + 4]
        w_ih = jax.random.uniform(kw[0], (4 * H, in_sz), jnp.float32, -k, k)
        w_hh = jax.random.uniform(kw[1], (4 * H, H), jnp.float32, -k, k)
        b_ih = jax.random.uniform(kw[2], (4 * H,), jnp.float32, -k, k)
        b_hh = jax.random.uniform(kw[3], (4 * H,), jnp.float32, -k, k)
        lstm.append((w_ih, w_hh, b_ih, b_hh))
    fc_w = jax.random.uniform(keys[-2], (O, H), jnp.float32, -k, k)
    fc_b = jax.random.uniform(keys[-1], (O,), jnp.float32, -k, k)
    return {"lstm": lstm, "fc": (fc_w, fc_b)}


def rnn_reference(x, params):
    """Pure-JAX reference mirroring torch.nn.LSTM + Linear semantics."""
    B, T, _ = x.shape
    H = HIDDEN_SIZE
    seq = x
    for l in range(NUM_LAYERS):
        w_ih, w_hh, b_ih, b_hh = params["lstm"][l]
        h = jnp.zeros((B, H), jnp.float32)
        c = jnp.zeros((B, H), jnp.float32)
        outs = []
        for t in range(T):
            gates = seq[:, t, :] @ w_ih.T + h @ w_hh.T + b_ih + b_hh
            i_g, f_g, g_g, o_g = jnp.split(gates, 4, axis=-1)
            i_g = jax.nn.sigmoid(i_g)
            f_g = jax.nn.sigmoid(f_g)
            g_g = jnp.tanh(g_g)
            o_g = jax.nn.sigmoid(o_g)
            c = f_g * c + i_g * g_g
            h = o_g * jnp.tanh(c)
            outs.append(h)
        seq = jnp.stack(outs, axis=1)
    fc_w, fc_b = params["fc"]
    return seq[:, -1, :] @ fc_w.T + fc_b


if __name__ == "__main__":
    key = jax.random.PRNGKey(0)
    k_x, k_p = jax.random.split(key)

    B, T = 2, 8                       # batch=2, seq=8, feature=INPUT_SIZE=28
    x = jax.random.normal(k_x, (B, T, INPUT_SIZE), jnp.float32)
    params = init_params(k_p)

    out = jax.jit(rnn_forward)(x, params)
    out = jax.block_until_ready(out)

    ref = rnn_reference(x, params)
    assert out.shape == (B, OUTPUT_SIZE)
    assert jnp.allclose(out, ref, rtol=1e-4, atol=1e-5), (out, ref)

    print("KERNEL_OK")
</pallas_src>

<mosaic_0001>
module attributes {stable_mosaic.version = 11 : i64} {
  func.func @kernel(%arg0: memref<64x28xf32, #tpu.memory_space<vmem>>, %arg1: memref<28x128xf32, #tpu.memory_space<vmem>>, %arg2: memref<32x128xf32, #tpu.memory_space<vmem>>, %arg3: memref<1x128xf32, #tpu.memory_space<vmem>>, %arg4: memref<32x128xf32, #tpu.memory_space<vmem>>, %arg5: memref<32x128xf32, #tpu.memory_space<vmem>>, %arg6: memref<1x128xf32, #tpu.memory_space<vmem>>, %arg7: memref<32x128xf32, #tpu.memory_space<vmem>>, %arg8: memref<1x128xf32, #tpu.memory_space<vmem>>, %arg9: memref<8x128xf32, #tpu.memory_space<vmem>>) attributes {dimension_semantics = [], scalar_prefetch = 0 : i64, scratch_operands = 0 : i64, tpu.core_type = #tpu.core_type<tc>} {
    %c0 = arith.constant 0 : index
    %c0_0 = arith.constant 0 : index
    %0 = vector.load %arg0[%c0, %c0_0] : memref<64x28xf32, #tpu.memory_space<vmem>>, vector<64x28xf32>
    %c0_1 = arith.constant 0 : index
    %c0_2 = arith.constant 0 : index
    %1 = vector.load %arg1[%c0_1, %c0_2] : memref<28x128xf32, #tpu.memory_space<vmem>>, vector<28x128xf32>
    %c0_3 = arith.constant 0 : index
    %c0_4 = arith.constant 0 : index
    %2 = vector.load %arg2[%c0_3, %c0_4] : memref<32x128xf32, #tpu.memory_space<vmem>>, vector<32x128xf32>
    %c0_5 = arith.constant 0 : index
    %c0_6 = arith.constant 0 : index
    %3 = vector.load %arg3[%c0_5, %c0_6] : memref<1x128xf32, #tpu.memory_space<vmem>>, vector<1x128xf32>
    %cst = arith.constant dense<0.000000e+00> : vector<64x128xf32>
    %4 = tpu.matmul %0, %1, %cst {dimension_numbers = #tpu.dot_dimension_numbers<[1], [0], [0], [1], [0, 0, 1, 1], [], []>} : vector<64x28xf32>, vector<28x128xf32>, vector<64x128xf32> -> vector<64x128xf32>
    %5 = vector.broadcast %3 : vector<1x128xf32> to vector<64x128xf32>
    %6 = arith.addf %4, %5 : vector<64x128xf32>
    %cst_7 = arith.constant 0.000000e+00 : f32
    %7 = vector.broadcast %cst_7 : f32 to vector<8x32xf32>
    %cst_8 = arith.constant 0.000000e+00 : f32
    %8 = vector.broadcast %cst_8 : f32 to vector<8x32xf32>
    %9 = vector.extract_strided_slice %6 {offsets = [0, 0], sizes = [8, 128], strides = [1, 1]} : vector<64x128xf32> to vector<8x128xf32>
    %cst_9 = arith.constant dense<0.000000e+00> : vector<8x128xf32>
    %10 = tpu.matmul %7, %2, %cst_9 {dimension_numbers = #tpu.dot_dimension_numbers<[1], [0], [0], [1], [0, 0, 1, 1], [], []>} : vector<8x32xf32>, vector<32x128xf32>, vector<8x128xf32> -> vector<8x128xf32>
    %11 = arith.addf %9, %10 : vector<8x128xf32>
    %12 = arith.negf %11 : vector<8x128xf32>
    %13 = math.exp %12 : vector<8x128xf32>
    %cst_10 = arith.constant 1.000000e+00 : f32
    %14 = vector.broadcast %cst_10 : f32 to vector<8x128xf32>
    %15 = arith.addf %14, %13 : vector<8x128xf32>
    %16 = arith.divf %14, %15 : vector<8x128xf32>
    %17 = vector.extract_strided_slice %16 {offsets = [0, 0], sizes = [8, 32], strides = [1, 1]} : vector<8x128xf32> to vector<8x32xf32>
    %18 = vector.extract_strided_slice %16 {offsets = [0, 32], sizes = [8, 32], strides = [1, 1]} : vector<8x128xf32> to vector<8x32xf32>
    %19 = vector.extract_strided_slice %16 {offsets = [0, 64], sizes = [8, 32], strides = [1, 1]} : vector<8x128xf32> to vector<8x32xf32>
    %cst_11 = arith.constant 2.000000e+00 : f32
    %20 = vector.broadcast %cst_11 : f32 to vector<8x32xf32>
    %21 = arith.mulf %20, %19 : vector<8x32xf32>
    %cst_12 = arith.constant 1.000000e+00 : f32
    %22 = vector.broadcast %cst_12 : f32 to vector<8x32xf32>
    %23 = arith.subf %21, %22 : vector<8x32xf32>
    %24 = vector.extract_strided_slice %16 {offsets = [0, 96], sizes = [8, 32], strides = [1, 1]} : vector<8x128xf32> to vector<8x32xf32>
    %25 = arith.mulf %18, %8 : vector<8x32xf32>
    %26 = arith.mulf %17, %23 : vector<8x32xf32>
    %27 = arith.addf %25, %26 : vector<8x32xf32>
    %28 = math.tanh %27 : vector<8x32xf32>
    %29 = arith.mulf %24, %28 : vector<8x32xf32>
    %30 = vector.extract_strided_slice %6 {offsets = [8, 0], sizes = [8, 128], strides = [1, 1]} : vector<64x128xf32> to vector<8x128xf32>
    %cst_13 = arith.constant dense<0.000000e+00> : vector<8x128xf32>
    %31 = tpu.matmul %29, %2, %cst_13 {dimension_numbers = #tpu.dot_dimension_numbers<[1], [0], [0], [1], [0, 0, 1, 1], [], []>} : vector<8x32xf32>, vector<32x128xf32>, vector<8x128xf32> -> vector<8x128xf32>
    %32 = arith.addf %30, %31 : vector<8x128xf32>
    %33 = arith.negf %32 : vector<8x128xf32>
    %34 = math.exp %33 : vector<8x128xf32>
    %cst_14 = arith.constant 1.000000e+00 : f32
    %35 = vector.broadcast %cst_14 : f32 to vector<8x128xf32>
    %36 = arith.addf %35, %34 : vector<8x128xf32>
    %37 = arith.divf %35, %36 : vector<8x128xf32>
    %38 = vector.extract_strided_slice %37 {offsets = [0, 0], sizes = [8, 32], strides = [1, 1]} : vector<8x128xf32> to vector<8x32xf32>
    %39 = vector.extract_strided_slice %37 {offsets = [0, 32], sizes = [8, 32], strides = [1, 1]} : vector<8x128xf32> to vector<8x32xf32>
    %40 = vector.extract_strided_slice %37 {offsets = [0, 64], sizes = [8, 32], strides = [1, 1]} : vector<8x128xf32> to vector<8x32xf32>
    %cst_15 = arith.constant 2.000000e+00 : f32
    %41 = vector.broadcast %cst_15 : f32 to vector<8x32xf32>
    %42 = arith.mulf %41, %40 : vector<8x32xf32>
    %cst_16 = arith.constant 1.000000e+00 : f32
    %43 = vector.broadcast %cst_16 : f32 to vector<8x32xf32>
    %44 = arith.subf %42, %43 : vector<8x32xf32>
    %45 = vector.extract_strided_slice %37 {offsets = [0, 96], sizes = [8, 32], strides = [1, 1]} : vector<8x128xf32> to vector<8x32xf32>
    %46 = arith.mulf %39, %27 : vector<8x32xf32>
    %47 = arith.mulf %38, %44 : vector<8x32xf32>
    %48 = arith.addf %46, %47 : vector<8x32xf32>
    %49 = math.tanh %48 : vector<8x32xf32>
    %50 = arith.mulf %45, %49 : vector<8x32xf32>
    %51 = vector.extract_strided_slice %6 {offsets = [16, 0], sizes = [8, 128], strides = [1, 1]} : vector<64x128xf32> to vector<8x128xf32>
    %cst_17 = arith.constant dense<0.000000e+00> : vector<8x128xf32>
    %52 = tpu.matmul %50, %2, %cst_17 {dimension_numbers = #tpu.dot_dimension_numbers<[1], [0], [0], [1], [0, 0, 1, 1], [], []>} : vector<8x32xf32>, vector<32x128xf32>, vector<8x128xf32> -> vector<8x128xf32>
    %53 = arith.addf %51, %52 : vector<8x128xf32>
    %54 = arith.negf %53 : vector<8x128xf32>
    %55 = math.exp %54 : vector<8x128xf32>
    %cst_18 = arith.constant 1.000000e+00 : f32
    %56 = vector.broadcast %cst_18 : f32 to vector<8x128xf32>
    %57 = arith.addf %56, %55 : vector<8x128xf32>
    %58 = arith.divf %56, %57 : vector<8x128xf32>
    %59 = vector.extract_strided_slice %58 {offsets = [0, 0], sizes = [8, 32], strides = [1, 1]} : vector<8x128xf32> to vector<8x32xf32>
    %60 = vector.extract_strided_slice %58 {offsets = [0, 32], sizes = [8, 32], strides = [1, 1]} : vector<8x128xf32> to vector<8x32xf32>
    %61 = vector.extract_strided_slice %58 {offsets = [0, 64], sizes = [8, 32], strides = [1, 1]} : vector<8x128xf32> to vector<8x32xf32>
    %cst_19 = arith.constant 2.000000e+00 : f32
    %62 = vector.broadcast %cst_19 : f32 to vector<8x32xf32>
    %63 = arith.mulf %62, %61 : vector<8x32xf32>
    %cst_20 = arith.constant 1.000000e+00 : f32
    %64 = vector.broadcast %cst_20 : f32 to vector<8x32xf32>
    %65 = arith.subf %63, %64 : vector<8x32xf32>
    %66 = vector.extract_strided_slice %58 {offsets = [0, 96], sizes = [8, 32], strides = [1, 1]} : vector<8x128xf32> to vector<8x32xf32>
    %67 = arith.mulf %60, %48 : vector<8x32xf32>
    %68 = arith.mulf %59, %65 : vector<8x32xf32>
    %69 = arith.addf %67, %68 : vector<8x32xf32>
    %70 = math.tanh %69 : vector<8x32xf32>
    %71 = arith.mulf %66, %70 : vector<8x32xf32>
    %72 = vector.extract_strided_slice %6 {offsets = [24, 0], sizes = [8, 128], strides = [1, 1]} : vector<64x128xf32> to vector<8x128xf32>
    %cst_21 = arith.constant dense<0.000000e+00> : vector<8x128xf32>
    %73 = tpu.matmul %71, %2, %cst_21 {dimension_numbers = #tpu.dot_dimension_numbers<[1], [0], [0], [1], [0, 0, 1, 1], [], []>} : vector<8x32xf32>, vector<32x128xf32>, vector<8x128xf32> -> vector<8x128xf32>
    %74 = arith.addf %72, %73 : vector<8x128xf32>
    %75 = arith.negf %74 : vector<8x128xf32>
    %76 = math.exp %75 : vector<8x128xf32>
    %cst_22 = arith.constant 1.000000e+00 : f32
    %77 = vector.broadcast %cst_22 : f32 to vector<8x128xf32>
    %78 = arith.addf %77, %76 : vector<8x128xf32>
    %79 = arith.divf %77, %78 : vector<8x128xf32>
    %80 = vector.extract_strided_slice %79 {offsets = [0, 0], sizes = [8, 32], strides = [1, 1]} : vector<8x128xf32> to vector<8x32xf32>
    %81 = vector.extract_strided_slice %79 {offsets = [0, 32], sizes = [8, 32], strides = [1, 1]} : vector<8x128xf32> to vector<8x32xf32>
    %82 = vector.extract_strided_slice %79 {offsets = [0, 64], sizes = [8, 32], strides = [1, 1]} : vector<8x128xf32> to vector<8x32xf32>
    %cst_23 = arith.constant 2.000000e+00 : f32
    %83 = vector.broadcast %cst_23 : f32 to vector<8x32xf32>
    %84 = arith.mulf %83, %82 : vector<8x32xf32>
    %cst_24 = arith.constant 1.000000e+00 : f32
    %85 = vector.broadcast %cst_24 : f32 to vector<8x32xf32>
    %86 = arith.subf %84, %85 : vector<8x32xf32>
    %87 = vector.extract_strided_slice %79 {offsets = [0, 96], sizes = [8, 32], strides = [1, 1]} : vector<8x128xf32> to vector<8x32xf32>
    %88 = arith.mulf %81, %69 : vector<8x32xf32>
    %89 = arith.mulf %80, %86 : vector<8x32xf32>
    %90 = arith.addf %88, %89 : vector<8x32xf32>
    %91 = math.tanh %90 : vector<8x32xf32>
    %92 = arith.mulf %87, %91 : vector<8x32xf32>
    %93 = vector.extract_strided_slice %6 {offsets = [32, 0], sizes = [8, 128], strides = [1, 1]} : vector<64x128xf32> to vector<8x128xf32>
    %cst_25 = arith.constant dense<0.000000e+00> : vector<8x128xf32>
    %94 = tpu.matmul %92, %2, %cst_25 {dimension_numbers = #tpu.dot_dimension_numbers<[1], [0], [0], [1], [0, 0, 1, 1], [], []>} : vector<8x32xf32>, vector<32x128xf32>, vector<8x128xf32> -> vector<8x128xf32>
    %95 = arith.addf %93, %94 : vector<8x128xf32>
    %96 = arith.negf %95 : vector<8x128xf32>
    %97 = math.exp %96 : vector<8x128xf32>
    %cst_26 = arith.constant 1.000000e+00 : f32
    %98 = vector.broadcast %cst_26 : f32 to vector<8x128xf32>
    %99 = arith.addf %98, %97 : vector<8x128xf32>
    %100 = arith.divf %98, %99 : vector<8x128xf32>
    %101 = vector.extract_strided_slice %100 {offsets = [0, 0], sizes = [8, 32], strides = [1, 1]} : vector<8x128xf32> to vector<8x32xf32>
    %102 = vector.extract_strided_slice %100 {offsets = [0, 32], sizes = [8, 32], strides = [1, 1]} : vector<8x128xf32> to vector<8x32xf32>
    %103 = vector.extract_strided_slice %100 {offsets = [0, 64], sizes = [8, 32], strides = [1, 1]} : vector<8x128xf32> to vector<8x32xf32>
    %cst_27 = arith.constant 2.000000e+00 : f32
    %104 = vector.broadcast %cst_27 : f32 to vector<8x32xf32>
    %105 = arith.mulf %104, %103 : vector<8x32xf32>
    %cst_28 = arith.constant 1.000000e+00 : f32
    %106 = vector.broadcast %cst_28 : f32 to vector<8x32xf32>
    %107 = arith.subf %105, %106 : vector<8x32xf32>
    %108 = vector.extract_strided_slice %100 {offsets = [0, 96], sizes = [8, 32], strides = [1, 1]} : vector<8x128xf32> to vector<8x32xf32>
    %109 = arith.mulf %102, %90 : vector<8x32xf32>
    %110 = arith.mulf %101, %107 : vector<8x32xf32>
    %111 = arith.addf %109, %110 : vector<8x32xf32>
    %112 = math.tanh %111 : vector<8x32xf32>
    %113 = arith.mulf %108, %112 : vector<8x32xf32>
    %114 = vector.extract_strided_slice %6 {offsets = [40, 0], sizes = [8, 128], strides = [1, 1]} : vector<64x128xf32> to vector<8x128xf32>
    %cst_29 = arith.constant dense<0.000000e+00> : vector<8x128xf32>
    %115 = tpu.matmul %113, %2, %cst_29 {dimension_numbers = #tpu.dot_dimension_numbers<[1], [0], [0], [1], [0, 0, 1, 1], [], []>} : vector<8x32xf32>, vector<32x128xf32>, vector<8x128xf32> -> vector<8x128xf32>
    %116 = arith.addf %114, %115 : vector<8x128xf32>
    %117 = arith.negf %116 : vector<8x128xf32>
    %118 = math.exp %117 : vector<8x128xf32>
    %cst_30 = arith.constant 1.000000e+00 : f32
    %119 = vector.broadcast %cst_30 : f32 to vector<8x128xf32>
    %120 = arith.addf %119, %118 : vector<8x128xf32>
    %121 = arith.divf %119, %120 : vector<8x128xf32>
    %122 = vector.extract_strided_slice %121 {offsets = [0, 0], sizes = [8, 32], strides = [1, 1]} : vector<8x128xf32> to vector<8x32xf32>
    %123 = vector.extract_strided_slice %121 {offsets = [0, 32], sizes = [8, 32], strides = [1, 1]} : vector<8x128xf32> to vector<8x32xf32>
    %124 = vector.extract_strided_slice %121 {offsets = [0, 64], sizes = [8, 32], strides = [1, 1]} : vector<8x128xf32> to vector<8x32xf32>
    %cst_31 = arith.constant 2.000000e+00 : f32
    %125 = vector.broadcast %cst_31 : f32 to vector<8x32xf32>
    %126 = arith.mulf %125, %124 : vector<8x32xf32>
    %cst_32 = arith.constant 1.000000e+00 : f32
    %127 = vector.broadcast %cst_32 : f32 to vector<8x32xf32>
    %128 = arith.subf %126, %127 : vector<8x32xf32>
    %129 = vector.extract_strided_slice %121 {offsets = [0, 96], sizes = [8, 32], strides = [1, 1]} : vector<8x128xf32> to vector<8x32xf32>
    %130 = arith.mulf %123, %111 : vector<8x32xf32>
    %131 = arith.mulf %122, %128 : vector<8x32xf32>
    %132 = arith.addf %130, %131 : vector<8x32xf32>
    %133 = math.tanh %132 : vector<8x32xf32>
    %134 = arith.mulf %129, %133 : vector<8x32xf32>
    %135 = vector.extract_strided_slice %6 {offsets = [48, 0], sizes = [8, 128], strides = [1, 1]} : vector<64x128xf32> to vector<8x128xf32>
    %cst_33 = arith.constant dense<0.000000e+00> : vector<8x128xf32>
    %136 = tpu.matmul %134, %2, %cst_33 {dimension_numbers = #tpu.dot_dimension_numbers<[1], [0], [0], [1], [0, 0, 1, 1], [], []>} : vector<8x32xf32>, vector<32x128xf32>, vector<8x128xf32> -> vector<8x128xf32>
    %137 = arith.addf %135, %136 : vector<8x128xf32>
    %138 = arith.negf %137 : vector<8x128xf32>
    %139 = math.exp %138 : vector<8x128xf32>
    %cst_34 = arith.constant 1.000000e+00 : f32
    %140 = vector.broadcast %cst_34 : f32 to vector<8x128xf32>
    %141 = arith.addf %140, %139 : vector<8x128xf32>
    %142 = arith.divf %140, %141 : vector<8x128xf32>
    %143 = vector.extract_strided_slice %142 {offsets = [0, 0], sizes = [8, 32], strides = [1, 1]} : vector<8x128xf32> to vector<8x32xf32>
    %144 = vector.extract_strided_slice %142 {offsets = [0, 32], sizes = [8, 32], strides = [1, 1]} : vector<8x128xf32> to vector<8x32xf32>
    %145 = vector.extract_strided_slice %142 {offsets = [0, 64], sizes = [8, 32], strides = [1, 1]} : vector<8x128xf32> to vector<8x32xf32>
    %cst_35 = arith.constant 2.000000e+00 : f32
    %146 = vector.broadcast %cst_35 : f32 to vector<8x32xf32>
    %147 = arith.mulf %146, %145 : vector<8x32xf32>
    %cst_36 = arith.constant 1.000000e+00 : f32
    %148 = vector.broadcast %cst_36 : f32 to vector<8x32xf32>
    %149 = arith.subf %147, %148 : vector<8x32xf32>
    %150 = vector.extract_strided_slice %142 {offsets = [0, 96], sizes = [8, 32], strides = [1, 1]} : vector<8x128xf32> to vector<8x32xf32>
    %151 = arith.mulf %144, %132 : vector<8x32xf32>
    %152 = arith.mulf %143, %149 : vector<8x32xf32>
    %153 = arith.addf %151, %152 : vector<8x32xf32>
    %154 = math.tanh %153 : vector<8x32xf32>
    %155 = arith.mulf %150, %154 : vector<8x32xf32>
    %156 = vector.extract_strided_slice %6 {offsets = [56, 0], sizes = [8, 128], strides = [1, 1]} : vector<64x128xf32> to vector<8x128xf32>
    %cst_37 = arith.constant dense<0.000000e+00> : vector<8x128xf32>
    %157 = tpu.matmul %155, %2, %cst_37 {dimension_numbers = #tpu.dot_dimension_numbers<[1], [0], [0], [1], [0, 0, 1, 1], [], []>} : vector<8x32xf32>, vector<32x128xf32>, vector<8x128xf32> -> vector<8x128xf32>
    %158 = arith.addf %156, %157 : vector<8x128xf32>
    %159 = arith.negf %158 : vector<8x128xf32>
    %160 = math.exp %159 : vector<8x128xf32>
    %cst_38 = arith.constant 1.000000e+00 : f32
    %161 = vector.broadcast %cst_38 : f32 to vector<8x128xf32>
    %162 = arith.addf %161, %160 : vector<8x128xf32>
    %163 = arith.divf %161, %162 : vector<8x128xf32>
    %164 = vector.extract_strided_slice %163 {offsets = [0, 0], sizes = [8, 32], strides = [1, 1]} : vector<8x128xf32> to vector<8x32xf32>
    %165 = vector.extract_strided_slice %163 {offsets = [0, 32], sizes = [8, 32], strides = [1, 1]} : vector<8x128xf32> to vector<8x32xf32>
    %166 = vector.extract_strided_slice %163 {offsets = [0, 64], sizes = [8, 32], strides = [1, 1]} : vector<8x128xf32> to vector<8x32xf32>
    %cst_39 = arith.constant 2.000000e+00 : f32
    %167 = vector.broadcast %cst_39 : f32 to vector<8x32xf32>
    %168 = arith.mulf %167, %166 : vector<8x32xf32>
    %cst_40 = arith.constant 1.000000e+00 : f32
    %169 = vector.broadcast %cst_40 : f32 to vector<8x32xf32>
    %170 = arith.subf %168, %169 : vector<8x32xf32>
    %171 = vector.extract_strided_slice %163 {offsets = [0, 96], sizes = [8, 32], strides = [1, 1]} : vector<8x128xf32> to vector<8x32xf32>
    %172 = arith.mulf %165, %153 : vector<8x32xf32>
    %173 = arith.mulf %164, %170 : vector<8x32xf32>
    %174 = arith.addf %172, %173 : vector<8x32xf32>
    %175 = math.tanh %174 : vector<8x32xf32>
    %176 = arith.mulf %171, %175 : vector<8x32xf32>
    %177 = tpu.concatenate %29, %50, %71, %92, %113, %134, %155, %176 in 0 : vector<8x32xf32>, vector<8x32xf32>, vector<8x32xf32>, vector<8x32xf32>, vector<8x32xf32>, vector<8x32xf32>, vector<8x32xf32>, vector<8x32xf32> -> vector<64x32xf32>
    %c0_41 = arith.constant 0 : index
    %c0_42 = arith.constant 0 : index
    %178 = vector.load %arg4[%c0_41, %c0_42] : memref<32x128xf32, #tpu.memory_space<vmem>>, vector<32x128xf32>
    %c0_43 = arith.constant 0 : index
    %c0_44 = arith.constant 0 : index
    %179 = vector.load %arg5[%c0_43, %c0_44] : memref<32x128xf32, #tpu.memory_space<vmem>>, vector<32x128xf32>
    %c0_45 = arith.constant 0 : index
    %c0_46 = arith.constant 0 : index
    %180 = vector.load %arg6[%c0_45, %c0_46] : memref<1x128xf32, #tpu.memory_space<vmem>>, vector<1x128xf32>
    %cst_47 = arith.constant dense<0.000000e+00> : vector<64x128xf32>
    %181 = tpu.matmul %177, %178, %cst_47 {dimension_numbers = #tpu.dot_dimension_numbers<[1], [0], [0], [1], [0, 0, 1, 1], [], []>} : vector<64x32xf32>, vector<32x128xf32>, vector<64x128xf32> -> vector<64x128xf32>
    %182 = vector.broadcast %180 : vector<1x128xf32> to vector<64x128xf32>
    %183 = arith.addf %181, %182 : vector<64x128xf32>
    %cst_48 = arith.constant 0.000000e+00 : f32
    %184 = vector.broadcast %cst_48 : f32 to vector<8x32xf32>
    %cst_49 = arith.constant 0.000000e+00 : f32
    %185 = vector.broadcast %cst_49 : f32 to vector<8x32xf32>
    %186 = vector.extract_strided_slice %183 {offsets = [0, 0], sizes = [8, 128], strides = [1, 1]} : vector<64x128xf32> to vector<8x128xf32>
    %cst_50 = arith.constant dense<0.000000e+00> : vector<8x128xf32>
    %187 = tpu.matmul %184, %179, %cst_50 {dimension_numbers = #tpu.dot_dimension_numbers<[1], [0], [0], [1], [0, 0, 1, 1], [], []>} : vector<8x32xf32>, vector<32x128xf32>, vector<8x128xf32> -> vector<8x128xf32>
    %188 = arith.addf %186, %187 : vector<8x128xf32>
    %189 = arith.negf %188 : vector<8x128xf32>
    %190 = math.exp %189 : vector<8x128xf32>
    %cst_51 = arith.constant 1.000000e+00 : f32
    %191 = vector.broadcast %cst_51 : f32 to vector<8x128xf32>
    %192 = arith.addf %191, %190 : vector<8x128xf32>
    %193 = arith.divf %191, %192 : vector<8x128xf32>
    %194 = vector.extract_strided_slice %193 {offsets = [0, 0], sizes = [8, 32], strides = [1, 1]} : vector<8x128xf32> to vector<8x32xf32>
    %195 = vector.extract_strided_slice %193 {offsets = [0, 32], sizes = [8, 32], strides = [1, 1]} : vector<8x128xf32> to vector<8x32xf32>
    %196 = vector.extract_strided_slice %193 {offsets = [0, 64], sizes = [8, 32], strides = [1, 1]} : vector<8x128xf32> to vector<8x32xf32>
    %cst_52 = arith.constant 2.000000e+00 : f32
    %197 = vector.broadcast %cst_52 : f32 to vector<8x32xf32>
    %198 = arith.mulf %197, %196 : vector<8x32xf32>
    %cst_53 = arith.constant 1.000000e+00 : f32
    %199 = vector.broadcast %cst_53 : f32 to vector<8x32xf32>
    %200 = arith.subf %198, %199 : vector<8x32xf32>
    %201 = vector.extract_strided_slice %193 {offsets = [0, 96], sizes = [8, 32], strides = [1, 1]} : vector<8x128xf32> to vector<8x32xf32>
    %202 = arith.mulf %195, %185 : vector<8x32xf32>
    %203 = arith.mulf %194, %200 : vector<8x32xf32>
    %204 = arith.addf %202, %203 : vector<8x32xf32>
    %205 = math.tanh %204 : vector<8x32xf32>
    %206 = arith.mulf %201, %205 : vector<8x32xf32>
    %207 = vector.extract_strided_slice %183 {offsets = [8, 0], sizes = [8, 128], strides = [1, 1]} : vector<64x128xf32> to vector<8x128xf32>
    %cst_54 = arith.constant dense<0.000000e+00> : vector<8x128xf32>
    %208 = tpu.matmul %206, %179, %cst_54 {dimension_numbers = #tpu.dot_dimension_numbers<[1], [0], [0], [1], [0, 0, 1, 1], [], []>} : vector<8x32xf32>, vector<32x128xf32>, vector<8x128xf32> -> vector<8x128xf32>
    %209 = arith.addf %207, %208 : vector<8x128xf32>
    %210 = arith.negf %209 : vector<8x128xf32>
    %211 = math.exp %210 : vector<8x128xf32>
    %cst_55 = arith.constant 1.000000e+00 : f32
    %212 = vector.broadcast %cst_55 : f32 to vector<8x128xf32>
    %213 = arith.addf %212, %211 : vector<8x128xf32>
    %214 = arith.divf %212, %213 : vector<8x128xf32>
    %215 = vector.extract_strided_slice %214 {offsets = [0, 0], sizes = [8, 32], strides = [1, 1]} : vector<8x128xf32> to vector<8x32xf32>
    %216 = vector.extract_strided_slice %214 {offsets = [0, 32], sizes = [8, 32], strides = [1, 1]} : vector<8x128xf32> to vector<8x32xf32>
    %217 = vector.extract_strided_slice %214 {offsets = [0, 64], sizes = [8, 32], strides = [1, 1]} : vector<8x128xf32> to vector<8x32xf32>
    %cst_56 = arith.constant 2.000000e+00 : f32
    %218 = vector.broadcast %cst_56 : f32 to vector<8x32xf32>
    %219 = arith.mulf %218, %217 : vector<8x32xf32>
    %cst_57 = arith.constant 1.000000e+00 : f32
    %220 = vector.broadcast %cst_57 : f32 to vector<8x32xf32>
    %221 = arith.subf %219, %220 : vector<8x32xf32>
    %222 = vector.extract_strided_slice %214 {offsets = [0, 96], sizes = [8, 32], strides = [1, 1]} : vector<8x128xf32> to vector<8x32xf32>
    %223 = arith.mulf %216, %204 : vector<8x32xf32>
    %224 = arith.mulf %215, %221 : vector<8x32xf32>
    %225 = arith.addf %223, %224 : vector<8x32xf32>
    %226 = math.tanh %225 : vector<8x32xf32>
    %227 = arith.mulf %222, %226 : vector<8x32xf32>
    %228 = vector.extract_strided_slice %183 {offsets = [16, 0], sizes = [8, 128], strides = [1, 1]} : vector<64x128xf32> to vector<8x128xf32>
    %cst_58 = arith.constant dense<0.000000e+00> : vector<8x128xf32>
    %229 = tpu.matmul %227, %179, %cst_58 {dimension_numbers = #tpu.dot_dimension_numbers<[1], [0], [0], [1], [0, 0, 1, 1], [], []>} : vector<8x32xf32>, vector<32x128xf32>, vector<8x128xf32> -> vector<8x128xf32>
    %230 = arith.addf %228, %229 : vector<8x128xf32>
    %231 = arith.negf %230 : vector<8x128xf32>
    %232 = math.exp %231 : vector<8x128xf32>
    %cst_59 = arith.constant 1.000000e+00 : f32
    %233 = vector.broadcast %cst_59 : f32 to vector<8x128xf32>
    %234 = arith.addf %233, %232 : vector<8x128xf32>
    %235 = arith.divf %233, %234 : vector<8x128xf32>
    %236 = vector.extract_strided_slice %235 {offsets = [0, 0], sizes = [8, 32], strides = [1, 1]} : vector<8x128xf32> to vector<8x32xf32>
    %237 = vector.extract_strided_slice %235 {offsets = [0, 32], sizes = [8, 32], strides = [1, 1]} : vector<8x128xf32> to vector<8x32xf32>
    %238 = vector.extract_strided_slice %235 {offsets = [0, 64], sizes = [8, 32], strides = [1, 1]} : vector<8x128xf32> to vector<8x32xf32>
    %cst_60 = arith.constant 2.000000e+00 : f32
    %239 = vector.broadcast %cst_60 : f32 to vector<8x32xf32>
    %240 = arith.mulf %239, %238 : vector<8x32xf32>
    %cst_61 = arith.constant 1.000000e+00 : f32
    %241 = vector.broadcast %cst_61 : f32 to vector<8x32xf32>
    %242 = arith.subf %240, %241 : vector<8x32xf32>
    %243 = vector.extract_strided_slice %235 {offsets = [0, 96], sizes = [8, 32], strides = [1, 1]} : vector<8x128xf32> to vector<8x32xf32>
    %244 = arith.mulf %237, %225 : vector<8x32xf32>
    %245 = arith.mulf %236, %242 : vector<8x32xf32>
    %246 = arith.addf %244, %245 : vector<8x32xf32>
    %247 = math.tanh %246 : vector<8x32xf32>
    %248 = arith.mulf %243, %247 : vector<8x32xf32>
    %249 = vector.extract_strided_slice %183 {offsets = [24, 0], sizes = [8, 128], strides = [1, 1]} : vector<64x128xf32> to vector<8x128xf32>
    %cst_62 = arith.constant dense<0.000000e+00> : vector<8x128xf32>
    %250 = tpu.matmul %248, %179, %cst_62 {dimension_numbers = #tpu.dot_dimension_numbers<[1], [0], [0], [1], [0, 0, 1, 1], [], []>} : vector<8x32xf32>, vector<32x128xf32>, vector<8x128xf32> -> vector<8x128xf32>
    %251 = arith.addf %249, %250 : vector<8x128xf32>
    %252 = arith.negf %251 : vector<8x128xf32>
    %253 = math.exp %252 : vector<8x128xf32>
    %cst_63 = arith.constant 1.000000e+00 : f32
    %254 = vector.broadcast %cst_63 : f32 to vector<8x128xf32>
    %255 = arith.addf %254, %253 : vector<8x128xf32>
    %256 = arith.divf %254, %255 : vector<8x128xf32>
    %257 = vector.extract_strided_slice %256 {offsets = [0, 0], sizes = [8, 32], strides = [1, 1]} : vector<8x128xf32> to vector<8x32xf32>
    %258 = vector.extract_strided_slice %256 {offsets = [0, 32], sizes = [8, 32], strides = [1, 1]} : vector<8x128xf32> to vector<8x32xf32>
    %259 = vector.extract_strided_slice %256 {offsets = [0, 64], sizes = [8, 32], strides = [1, 1]} : vector<8x128xf32> to vector<8x32xf32>
    %cst_64 = arith.constant 2.000000e+00 : f32
    %260 = vector.broadcast %cst_64 : f32 to vector<8x32xf32>
    %261 = arith.mulf %260, %259 : vector<8x32xf32>
    %cst_65 = arith.constant 1.000000e+00 : f32
    %262 = vector.broadcast %cst_65 : f32 to vector<8x32xf32>
    %263 = arith.subf %261, %262 : vector<8x32xf32>
    %264 = vector.extract_strided_slice %256 {offsets = [0, 96], sizes = [8, 32], strides = [1, 1]} : vector<8x128xf32> to vector<8x32xf32>
    %265 = arith.mulf %258, %246 : vector<8x32xf32>
    %266 = arith.mulf %257, %263 : vector<8x32xf32>
    %267 = arith.addf %265, %266 : vector<8x32xf32>
    %268 = math.tanh %267 : vector<8x32xf32>
    %269 = arith.mulf %264, %268 : vector<8x32xf32>
    %270 = vector.extract_strided_slice %183 {offsets = [32, 0], sizes = [8, 128], strides = [1, 1]} : vector<64x128xf32> to vector<8x128xf32>
    %cst_66 = arith.constant dense<0.000000e+00> : vector<8x128xf32>
    %271 = tpu.matmul %269, %179, %cst_66 {dimension_numbers = #tpu.dot_dimension_numbers<[1], [0], [0], [1], [0, 0, 1, 1], [], []>} : vector<8x32xf32>, vector<32x128xf32>, vector<8x128xf32> -> vector<8x128xf32>
    %272 = arith.addf %270, %271 : vector<8x128xf32>
    %273 = arith.negf %272 : vector<8x128xf32>
    %274 = math.exp %273 : vector<8x128xf32>
    %cst_67 = arith.constant 1.000000e+00 : f32
    %275 = vector.broadcast %cst_67 : f32 to vector<8x128xf32>
    %276 = arith.addf %275, %274 : vector<8x128xf32>
    %277 = arith.divf %275, %276 : vector<8x128xf32>
    %278 = vector.extract_strided_slice %277 {offsets = [0, 0], sizes = [8, 32], strides = [1, 1]} : vector<8x128xf32> to vector<8x32xf32>
    %279 = vector.extract_strided_slice %277 {offsets = [0, 32], sizes = [8, 32], strides = [1, 1]} : vector<8x128xf32> to vector<8x32xf32>
    %280 = vector.extract_strided_slice %277 {offsets = [0, 64], sizes = [8, 32], strides = [1, 1]} : vector<8x128xf32> to vector<8x32xf32>
    %cst_68 = arith.constant 2.000000e+00 : f32
    %281 = vector.broadcast %cst_68 : f32 to vector<8x32xf32>
    %282 = arith.mulf %281, %280 : vector<8x32xf32>
    %cst_69 = arith.constant 1.000000e+00 : f32
    %283 = vector.broadcast %cst_69 : f32 to vector<8x32xf32>
    %284 = arith.subf %282, %283 : vector<8x32xf32>
    %285 = vector.extract_strided_slice %277 {offsets = [0, 96], sizes = [8, 32], strides = [1, 1]} : vector<8x128xf32> to vector<8x32xf32>
    %286 = arith.mulf %279, %267 : vector<8x32xf32>
    %287 = arith.mulf %278, %284 : vector<8x32xf32>
    %288 = arith.addf %286, %287 : vector<8x32xf32>
    %289 = math.tanh %288 : vector<8x32xf32>
    %290 = arith.mulf %285, %289 : vector<8x32xf32>
    %291 = vector.extract_strided_slice %183 {offsets = [40, 0], sizes = [8, 128], strides = [1, 1]} : vector<64x128xf32> to vector<8x128xf32>
    %cst_70 = arith.constant dense<0.000000e+00> : vector<8x128xf32>
    %292 = tpu.matmul %290, %179, %cst_70 {dimension_numbers = #tpu.dot_dimension_numbers<[1], [0], [0], [1], [0, 0, 1, 1], [], []>} : vector<8x32xf32>, vector<32x128xf32>, vector<8x128xf32> -> vector<8x128xf32>
    %293 = arith.addf %291, %292 : vector<8x128xf32>
    %294 = arith.negf %293 : vector<8x128xf32>
    %295 = math.exp %294 : vector<8x128xf32>
    %cst_71 = arith.constant 1.000000e+00 : f32
    %296 = vector.broadcast %cst_71 : f32 to vector<8x128xf32>
    %297 = arith.addf %296, %295 : vector<8x128xf32>
    %298 = arith.divf %296, %297 : vector<8x128xf32>
    %299 = vector.extract_strided_slice %298 {offsets = [0, 0], sizes = [8, 32], strides = [1, 1]} : vector<8x128xf32> to vector<8x32xf32>
    %300 = vector.extract_strided_slice %298 {offsets = [0, 32], sizes = [8, 32], strides = [1, 1]} : vector<8x128xf32> to vector<8x32xf32>
    %301 = vector.extract_strided_slice %298 {offsets = [0, 64], sizes = [8, 32], strides = [1, 1]} : vector<8x128xf32> to vector<8x32xf32>
    %cst_72 = arith.constant 2.000000e+00 : f32
    %302 = vector.broadcast %cst_72 : f32 to vector<8x32xf32>
    %303 = arith.mulf %302, %301 : vector<8x32xf32>
    %cst_73 = arith.constant 1.000000e+00 : f32
    %304 = vector.broadcast %cst_73 : f32 to vector<8x32xf32>
    %305 = arith.subf %303, %304 : vector<8x32xf32>
    %306 = vector.extract_strided_slice %298 {offsets = [0, 96], sizes = [8, 32], strides = [1, 1]} : vector<8x128xf32> to vector<8x32xf32>
    %307 = arith.mulf %300, %288 : vector<8x32xf32>
    %308 = arith.mulf %299, %305 : vector<8x32xf32>
    %309 = arith.addf %307, %308 : vector<8x32xf32>
    %310 = math.tanh %309 : vector<8x32xf32>
    %311 = arith.mulf %306, %310 : vector<8x32xf32>
    %312 = vector.extract_strided_slice %183 {offsets = [48, 0], sizes = [8, 128], strides = [1, 1]} : vector<64x128xf32> to vector<8x128xf32>
    %cst_74 = arith.constant dense<0.000000e+00> : vector<8x128xf32>
    %313 = tpu.matmul %311, %179, %cst_74 {dimension_numbers = #tpu.dot_dimension_numbers<[1], [0], [0], [1], [0, 0, 1, 1], [], []>} : vector<8x32xf32>, vector<32x128xf32>, vector<8x128xf32> -> vector<8x128xf32>
    %314 = arith.addf %312, %313 : vector<8x128xf32>
    %315 = arith.negf %314 : vector<8x128xf32>
    %316 = math.exp %315 : vector<8x128xf32>
    %cst_75 = arith.constant 1.000000e+00 : f32
    %317 = vector.broadcast %cst_75 : f32 to vector<8x128xf32>
    %318 = arith.addf %317, %316 : vector<8x128xf32>
    %319 = arith.divf %317, %318 : vector<8x128xf32>
    %320 = vector.extract_strided_slice %319 {offsets = [0, 0], sizes = [8, 32], strides = [1, 1]} : vector<8x128xf32> to vector<8x32xf32>
    %321 = vector.extract_strided_slice %319 {offsets = [0, 32], sizes = [8, 32], strides = [1, 1]} : vector<8x128xf32> to vector<8x32xf32>
    %322 = vector.extract_strided_slice %319 {offsets = [0, 64], sizes = [8, 32], strides = [1, 1]} : vector<8x128xf32> to vector<8x32xf32>
    %cst_76 = arith.constant 2.000000e+00 : f32
    %323 = vector.broadcast %cst_76 : f32 to vector<8x32xf32>
    %324 = arith.mulf %323, %322 : vector<8x32xf32>
    %cst_77 = arith.constant 1.000000e+00 : f32
    %325 = vector.broadcast %cst_77 : f32 to vector<8x32xf32>
    %326 = arith.subf %324, %325 : vector<8x32xf32>
    %327 = vector.extract_strided_slice %319 {offsets = [0, 96], sizes = [8, 32], strides = [1, 1]} : vector<8x128xf32> to vector<8x32xf32>
    %328 = arith.mulf %321, %309 : vector<8x32xf32>
    %329 = arith.mulf %320, %326 : vector<8x32xf32>
    %330 = arith.addf %328, %329 : vector<8x32xf32>
    %331 = math.tanh %330 : vector<8x32xf32>
    %332 = arith.mulf %327, %331 : vector<8x32xf32>
    %333 = vector.extract_strided_slice %183 {offsets = [56, 0], sizes = [8, 128], strides = [1, 1]} : vector<64x128xf32> to vector<8x128xf32>
    %cst_78 = arith.constant dense<0.000000e+00> : vector<8x128xf32>
    %334 = tpu.matmul %332, %179, %cst_78 {dimension_numbers = #tpu.dot_dimension_numbers<[1], [0], [0], [1], [0, 0, 1, 1], [], []>} : vector<8x32xf32>, vector<32x128xf32>, vector<8x128xf32> -> vector<8x128xf32>
    %335 = arith.addf %333, %334 : vector<8x128xf32>
    %336 = arith.negf %335 : vector<8x128xf32>
    %337 = math.exp %336 : vector<8x128xf32>
    %cst_79 = arith.constant 1.000000e+00 : f32
    %338 = vector.broadcast %cst_79 : f32 to vector<8x128xf32>
    %339 = arith.addf %338, %337 : vector<8x128xf32>
    %340 = arith.divf %338, %339 : vector<8x128xf32>
    %341 = vector.extract_strided_slice %340 {offsets = [0, 0], sizes = [8, 32], strides = [1, 1]} : vector<8x128xf32> to vector<8x32xf32>
    %342 = vector.extract_strided_slice %340 {offsets = [0, 32], sizes = [8, 32], strides = [1, 1]} : vector<8x128xf32> to vector<8x32xf32>
    %343 = vector.extract_strided_slice %340 {offsets = [0, 64], sizes = [8, 32], strides = [1, 1]} : vector<8x128xf32> to vector<8x32xf32>
    %cst_80 = arith.constant 2.000000e+00 : f32
    %344 = vector.broadcast %cst_80 : f32 to vector<8x32xf32>
    %345 = arith.mulf %344, %343 : vector<8x32xf32>
    %cst_81 = arith.constant 1.000000e+00 : f32
    %346 = vector.broadcast %cst_81 : f32 to vector<8x32xf32>
    %347 = arith.subf %345, %346 : vector<8x32xf32>
    %348 = vector.extract_strided_slice %340 {offsets = [0, 96], sizes = [8, 32], strides = [1, 1]} : vector<8x128xf32> to vector<8x32xf32>
    %349 = arith.mulf %342, %330 : vector<8x32xf32>
    %350 = arith.mulf %341, %347 : vector<8x32xf32>
    %351 = arith.addf %349, %350 : vector<8x32xf32>
    %352 = math.tanh %351 : vector<8x32xf32>
    %353 = arith.mulf %348, %352 : vector<8x32xf32>
    %c0_82 = arith.constant 0 : index
    %c0_83 = arith.constant 0 : index
    %354 = vector.load %arg7[%c0_82, %c0_83] : memref<32x128xf32, #tpu.memory_space<vmem>>, vector<32x128xf32>
    %cst_84 = arith.constant dense<0.000000e+00> : vector<8x128xf32>
    %355 = tpu.matmul %353, %354, %cst_84 {dimension_numbers = #tpu.dot_dimension_numbers<[1], [0], [0], [1], [0, 0, 1, 1], [], []>} : vector<8x32xf32>, vector<32x128xf32>, vector<8x128xf32> -> vector<8x128xf32>
    %c0_85 = arith.constant 0 : index
    %c0_86 = arith.constant 0 : index
    %356 = vector.load %arg8[%c0_85, %c0_86] : memref<1x128xf32, #tpu.memory_space<vmem>>, vector<1x128xf32>
    %357 = vector.broadcast %356 : vector<1x128xf32> to vector<8x128xf32>
    %358 = arith.addf %355, %357 : vector<8x128xf32>
    %c0_87 = arith.constant 0 : index
    %c0_88 = arith.constant 0 : index
    %359 = vector.load %arg9[%c0_87, %c0_88] : memref<8x128xf32, #tpu.memory_space<vmem>>, vector<8x128xf32>
    tpu.vector_store %arg9[%c0_87, %c0_88], %358 {strides = array<i32>} : memref<8x128xf32, #tpu.memory_space<vmem>>, vector<8x128xf32>,
    return
  }
}

</mosaic_0001>

<llo_original>
// kernel: rnn_forward.1
$region0: #{rnn_forward.1}
  #allocation0 [shape = 'u32[]', space=smem, size = 0x4, offset = 0x4, fixed_abs, tag = 'smem constant byte address 0x4 - core index']
  #allocation1 [shape = 'u32[144,128]{1,0:T(1,128)}', space=vmem, size = 0x12000, scoped, tag = 'internal scratch']
  %s0 = inlined_call_operand.vmem [shape: f32[64,28], index: 0, kind: input, shape index: {}]
  %s1 = inlined_call_operand.vmem [shape: f32[28,128], index: 1, kind: input, shape index: {}]
  %s2 = inlined_call_operand.vmem [shape: f32[32,128], index: 2, kind: input, shape index: {}]
  %s3 = inlined_call_operand.vmem [shape: f32[1,128], index: 3, kind: input, shape index: {}]
  %s4 = inlined_call_operand.vmem [shape: f32[32,128], index: 4, kind: input, shape index: {}]
  %s5 = inlined_call_operand.vmem [shape: f32[32,128], index: 5, kind: input, shape index: {}]
  %s6 = inlined_call_operand.vmem [shape: f32[1,128], index: 6, kind: input, shape index: {}]
  %s7 = inlined_call_operand.vmem [shape: f32[32,128], index: 7, kind: input, shape index: {}]
  %s8 = inlined_call_operand.vmem [shape: f32[1,128], index: 8, kind: input, shape index: {}]
  %s9 = inlined_call_operand.vmem [shape: f32[8,128], index: 9, kind: output, shape index: {}]
  %s10 = sld [smem:[#allocation0]]
  $region46: #{rnn_forward.1} parent=0
    _
  %s12 = ssub.s32 1, %s10
  %s13 = scalar_select 0, %s12, %s10
  // Predicated region
  $region2: #{rnn_forward.1} parent=0 // pred_check
    _
  $region3: #{rnn_forward.1} parent=0 // pred_check_branch
    %15 = sbr.rel (0) target = $region5
  $region4: #{rnn_forward.1} parent=0 // pred_region
    _
  $region5: #{rnn_forward.1} parent=0 // pred_fallthru
    _
  // Predicated region
  $region6: #{rnn_forward.1} parent=0 // pred_check
    _
  $region7: #{rnn_forward.1} parent=0 // pred_check_branch
    %17 = sbr.rel (0) target = $region9
  $region8: #{rnn_forward.1} parent=0 // pred_region
    _
  $region9: #{rnn_forward.1} parent=0 // pred_fallthru
    _
  // Predicated region
  $region10: #{rnn_forward.1} parent=0 // pred_check
    _
  $region11: #{rnn_forward.1} parent=0 // pred_check_branch
    %19 = sbr.rel (0) target = $region13
  $region12: #{rnn_forward.1} parent=0 // pred_region
    _
  $region13: #{rnn_forward.1} parent=0 // pred_fallthru
    _
  // Predicated region
  $region14: #{rnn_forward.1} parent=0 // pred_check
    _
  $region15: #{rnn_forward.1} parent=0 // pred_check_branch
    %21 = sbr.rel (0) target = $region17
  $region16: #{rnn_forward.1} parent=0 // pred_region
    _
  $region17: #{rnn_forward.1} parent=0 // pred_fallthru
    _
  // Predicated region
  $region18: #{rnn_forward.1} parent=0 // pred_check
    _
  $region19: #{rnn_forward.1} parent=0 // pred_check_branch
    %23 = sbr.rel (0) target = $region21
  $region20: #{rnn_forward.1} parent=0 // pred_region
    _
  $region21: #{rnn_forward.1} parent=0 // pred_fallthru
    _
  // Predicated region
  $region22: #{rnn_forward.1} parent=0 // pred_check
    _
  $region23: #{rnn_forward.1} parent=0 // pred_check_branch
    %25 = sbr.rel (0) target = $region25
  $region24: #{rnn_forward.1} parent=0 // pred_region
    _
  $region25: #{rnn_forward.1} parent=0 // pred_fallthru
    _
  // Predicated region
  $region26: #{rnn_forward.1} parent=0 // pred_check
    _
  $region27: #{rnn_forward.1} parent=0 // pred_check_branch
    %27 = sbr.rel (0) target = $region29
  $region28: #{rnn_forward.1} parent=0 // pred_region
    _
  $region29: #{rnn_forward.1} parent=0 // pred_fallthru
    _
  // Predicated region
  $region30: #{rnn_forward.1} parent=0 // pred_check
    _
  $region31: #{rnn_forward.1} parent=0 // pred_check_branch
    %29 = sbr.rel (0) target = $region33
  $region32: #{rnn_forward.1} parent=0 // pred_region
    _
  $region33: #{rnn_forward.1} parent=0 // pred_fallthru
    _
  // Predicated region
  $region34: #{rnn_forward.1} parent=0 // pred_check
    _
  $region35: #{rnn_forward.1} parent=0 // pred_check_branch
    %31 = sbr.rel (0) target = $region37
  $region36: #{rnn_forward.1} parent=0 // pred_region
    _
  $region37: #{rnn_forward.1} parent=0 // pred_fallthru
    _
  %v32 = vld [vmem:[%s0] sm:$0xff]
  %v33 = vld [vmem:[%s0 + $0x8] sm:$0xff]
  %v34 = vld [vmem:[%s0 + $0x10] sm:$0xff]
  %v35 = vld [vmem:[%s0 + $0x18] sm:$0xff]
  %v36 = vld [vmem:[%s0 + $0x20] sm:$0xff]
  %v37 = vld [vmem:[%s0 + $0x28] sm:$0xff]
  %v38 = vld [vmem:[%s0 + $0x30] sm:$0xff]
  %v39 = vld [vmem:[%s0 + $0x38] sm:$0xff]
  %v40 = vld [vmem:[%s1] sm:$0xff]
  %v41 = vld [vmem:[%s1 + $0x8] sm:$0xff]
  %v42 = vld [vmem:[%s1 + $0x10] sm:$0xff]
  %v43 = vld [vmem:[%s1 + $0x18] sm:$0xf]
  %v44 = vld [vmem:[%s2] sm:$0xff]
  %v45 = vld [vmem:[%s2 + $0x8] sm:$0xff]
  %v46 = vld [vmem:[%s2 + $0x10] sm:$0xff]
  %v47 = vld [vmem:[%s2 + $0x18] sm:$0xff]
  %v48 = vld [vmem:[%s3] sm:$0x1]
  %v50 = vlaneseq
  %v51 = vshrl.u32 %v50, 7
  %v52 = vsub.s32 0, %v51
  %v53 = vrot.slane %v48, %v52
  %vm55 = vcmask 228352
  %v57 = vsel %vm55, %v32, 0
  %v60 = vsel %vm55, %v33, 0
  %v63 = vsel %vm55, %v34, 0
  %v66 = vsel %vm55, %v35, 0
  %v69 = vsel %vm55, %v36, 0
  %v72 = vsel %vm55, %v37, 0
  %v75 = vsel %vm55, %v38, 0
  %v78 = vsel %vm55, %v39, 0
  %vm80 = vcmask 1043456
  %v82 = vsel %vm80, %v43, 0
  %84 = vmatprep.subr.mxu0 0.0
  %85 = vmatpush1.msra.mxu0 %v40
  %86 = vmatprep.subr.mxu0 0.0
  %87 = vmatpush1.msra.mxu0 %v41
  %88 = vmatprep.subr.mxu0 0.0
  %89 = vmatpush1.msra.mxu0 %v42
  %90 = vmatprep.subr.mxu0 0.0
  %91 = vmatpush1.msra.mxu0 %v82
  %92 = vmatprep.subr.mxu0 0.0
  %93 = vmatpush1.msra.mxu0 0.0
  %94 = vmatprep.subr.mxu0 0.0
  %95 = vmatpush1.msra.mxu0 0.0
  %96 = vmatprep.subr.mxu0 0.0
  %97 = vmatpush1.msra.mxu0 0.0
  %98 = vmatprep.subr.mxu0 0.0
  %99 = vmatpush1.msra.mxu0 0.0
  %100 = vmatprep.subr.mxu0 0.0
  %101 = vmatpush1.msra.mxu0 0.0
  %102 = vmatprep.subr.mxu0 0.0
  %103 = vmatpush1.msra.mxu0 0.0
  %104 = vmatprep.subr.mxu0 0.0
  %105 = vmatpush1.msra.mxu0 0.0
  %106 = vmatprep.subr.mxu0 0.0
  %107 = vmatpush1.msra.mxu0 0.0
  %108 = vmatprep.subr.mxu0 0.0
  %109 = vmatpush1.msra.mxu0 0.0
  %110 = vmatprep.subr.mxu0 0.0
  %111 = vmatpush1.msra.mxu0 0.0
  %112 = vmatprep.subr.mxu0 0.0
  %113 = vmatpush1.msra.mxu0 0.0
  %114 = vmatprep.subr.mxu0 0.0
  %115 = vmatpush1.msra.mxu0 0.0
  %116 = vmatprep.subr.mxu0 0.0
  %117 = vmatpush1.msra.mxu0 0.0
  %118 = vmatprep.subr.mxu0 0.0
  %119 = vmatpush1.msra.mxu0 0.0
  %120 = vmatprep.subr.mxu0 0.0
  %121 = vmatpush1.msra.mxu0 0.0
  %122 = vmatprep.subr.mxu0 0.0
  %123 = vmatpush1.msra.mxu0 0.0
  %124 = vmatprep.subr.mxu0 0.0
  %125 = vmatpush1.msra.mxu0 0.0
  %126 = vmatprep.subr.mxu0 0.0
  %127 = vmatpush1.msra.mxu0 0.0
  %128 = vmatprep.subr.mxu0 0.0
  %129 = vmatpush1.msra.mxu0 0.0
  %130 = vmatprep.subr.mxu0 0.0
  %131 = vmatpush1.msra.mxu0 0.0
  %132 = vmatprep.subr.mxu0 0.0
  %133 = vmatpush1.msra.mxu0 0.0
  %134 = vmatprep.subr.mxu0 0.0
  %135 = vmatpush1.msra.mxu0 0.0
  %136 = vmatprep.subr.mxu0 0.0
  %137 = vmatpush1.msra.mxu0 0.0
  %138 = vmatprep.subr.mxu0 0.0
  %139 = vmatpush1.msra.mxu0 0.0
  %140 = vmatprep.subr.mxu0 0.0
  %141 = vmatpush1.msra.mxu0 0.0
  %142 = vmatprep.subr.mxu0 0.0
  %143 = vmatpush1.msra.mxu0 0.0
  %144 = vmatprep.subr.mxu0 0.0
  %145 = vmatpush1.msra.mxu0 0.0
  %146 = vmatprep.subr.mxu0 0.0
  %147 = vmatpush1.msra.mxu0 0.0
  %148 = vmatprep.mubr.f32.mxu0 0.0
  %149 = vmatmul.mubr.f32.gmra.mrb[0].mxu0 %v57
  %v150 = vpop.f32.mrb[0].mxu0
  %v151 = vadd.f32 %v53, %v150
  %v152 = vpop.f32.mrb[0].mxu0
  %153 = vmatprep.mubr.f32.mxu0 0.0
  %154 = vmatmul.mubr.f32.gmra.mrb[0].mxu0 %v60
  %v155 = vpop.f32.mrb[0].mxu0
  %v156 = vadd.f32 %v53, %v155
  %v157 = vpop.f32.mrb[0].mxu0
  %158 = vmatprep.mubr.f32.mxu0 0.0
  %159 = vmatmul.mubr.f32.gmra.mrb[0].mxu0 %v63
  %v160 = vpop.f32.mrb[0].mxu0
  %v161 = vadd.f32 %v53, %v160
  %v162 = vpop.f32.mrb[0].mxu0
  %163 = vmatprep.mubr.f32.mxu0 0.0
  %164 = vmatmul.mubr.f32.gmra.mrb[0].mxu0 %v66
  %v165 = vpop.f32.mrb[0].mxu0
  %v166 = vadd.f32 %v53, %v165
  %v167 = vpop.f32.mrb[0].mxu0
  %168 = vmatprep.mubr.f32.mxu0 0.0
  %169 = vmatmul.mubr.f32.gmra.mrb[0].mxu0 %v69
  %v170 = vpop.f32.mrb[0].mxu0
  %v171 = vadd.f32 %v53, %v170
  %v172 = vpop.f32.mrb[0].mxu0
  %173 = vmatprep.mubr.f32.mxu0 0.0
  %174 = vmatmul.mubr.f32.gmra.mrb[0].mxu0 %v72
  %v175 = vpop.f32.mrb[0].mxu0
  %v176 = vadd.f32 %v53, %v175
  %v177 = vpop.f32.mrb[0].mxu0
  %178 = vmatprep.mubr.f32.mxu0 0.0
  %179 = vmatmul.mubr.f32.gmra.mrb[0].mxu0 %v75
  %v180 = vpop.f32.mrb[0].mxu0
  %v181 = vadd.f32 %v53, %v180
  %v182 = vpop.f32.mrb[0].mxu0
  %183 = vmatprep.mubr.f32.mxu0 0.0
  %184 = vmatmul.mubr.f32.gmra.mrb[0].mxu0 %v78
  %v185 = vpop.f32.mrb[0].mxu0
  %v186 = vadd.f32 %v53, %v185
  %v187 = vpop.f32.mrb[0].mxu0
  %188 = vdwg.mxu0
  %vm189 = vcmask 261120
  %v191 = vsel %vm189, 0.0, 0
  %193 = vmatprep.subr.mxu0 0.0
  %194 = vmatpush1.msra.mxu0 %v44
  %195 = vmatprep.subr.mxu0 0.0
  %196 = vmatpush1.msra.mxu0 %v45
  %197 = vmatprep.subr.mxu0 0.0
  %198 = vmatpush1.msra.mxu0 %v46
  %199 = vmatprep.subr.mxu0 0.0
  %200 = vmatpush1.msra.mxu0 %v47
  %201 = vmatprep.subr.mxu0 0.0
  %202 = vmatpush1.msra.mxu0 0.0
  %203 = vmatprep.subr.mxu0 0.0
  %204 = vmatpush1.msra.mxu0 0.0
  %205 = vmatprep.subr.mxu0 0.0
  %206 = vmatpush1.msra.mxu0 0.0
  %207 = vmatprep.subr.mxu0 0.0
  %208 = vmatpush1.msra.mxu0 0.0
  %209 = vmatprep.subr.mxu0 0.0
  %210 = vmatpush1.msra.mxu0 0.0
  %211 = vmatprep.subr.mxu0 0.0
  %212 = vmatpush1.msra.mxu0 0.0
  %213 = vmatprep.subr.mxu0 0.0
  %214 = vmatpush1.msra.mxu0 0.0
  %215 = vmatprep.subr.mxu0 0.0
  %216 = vmatpush1.msra.mxu0 0.0
  %217 = vmatprep.subr.mxu0 0.0
  %218 = vmatpush1.msra.mxu0 0.0
  %219 = vmatprep.subr.mxu0 0.0
  %220 = vmatpush1.msra.mxu0 0.0
  %221 = vmatprep.subr.mxu0 0.0
  %222 = vmatpush1.msra.mxu0 0.0
  %223 = vmatprep.subr.mxu0 0.0
  %224 = vmatpush1.msra.mxu0 0.0
  %225 = vmatprep.subr.mxu0 0.0
  %226 = vmatpush1.msra.mxu0 0.0
  %227 = vmatprep.subr.mxu0 0.0
  %228 = vmatpush1.msra.mxu0 0.0
  %229 = vmatprep.subr.mxu0 0.0
  %230 = vmatpush1.msra.mxu0 0.0
  %231 = vmatprep.subr.mxu0 0.0
  %232 = vmatpush1.msra.mxu0 0.0
  %233 = vmatprep.subr.mxu0 0.0
  %234 = vmatpush1.msra.mxu0 0.0
  %235 = vmatprep.subr.mxu0 0.0
  %236 = vmatpush1.msra.mxu0 0.0
  %237 = vmatprep.subr.mxu0 0.0
  %238 = vmatpush1.msra.mxu0 0.0
  %239 = vmatprep.subr.mxu0 0.0
  %240 = vmatpush1.msra.mxu0 0.0
  %241 = vmatprep.subr.mxu0 0.0
  %242 = vmatpush1.msra.mxu0 0.0
  %243 = vmatprep.subr.mxu0 0.0
  %244 = vmatpush1.msra.mxu0 0.0
  %245 = vmatprep.subr.mxu0 0.0
  %246 = vmatpush1.msra.mxu0 0.0
  %247 = vmatprep.subr.mxu0 0.0
  %248 = vmatpush1.msra.mxu0 0.0
  %249 = vmatprep.subr.mxu0 0.0
  %250 = vmatpush1.msra.mxu0 0.0
  %251 = vmatprep.subr.mxu0 0.0
  %252 = vmatpush1.msra.mxu0 0.0
  %253 = vmatprep.subr.mxu0 0.0
  %254 = vmatpush1.msra.mxu0 0.0
  %255 = vmatprep.subr.mxu0 0.0
  %256 = vmatpush1.msra.mxu0 0.0
  %257 = vmatprep.mubr.f32.mxu0 0.0
  %258 = vmatmul.mubr.f32.gmra.mrb[0].mxu0 %v191
  %v259 = vpop.f32.mrb[0].mxu0
  %v260 = vadd.f32 0.0, %v259
  %v261 = vpop.f32.mrb[0].mxu0
  %262 = vdwg.mxu0
  %v263 = vadd.f32 %v151, %v260
  %v264 = vxor.u32 %v263, 2147483648
  %v265 = vmul.f32 %v264, 1.442695
  %v266 = vpow.pop %v265
  %v267 = vadd.f32 %v266, 1.0
  %v268 = vrcp.pop %v267
  %v269 = vmul.f32 1.0, %v268
  %v270 = vmul.f32 %v269, 2.0
  %v271 = vsub.f32 %v270, 1.0
  %v272 = vmul.f32 %v269, 0.0
  %274 = vrot.lane.b32.xlu0 %v271, 64
  %v275 = vpop.permute.xlu0 %274
  %v277 = vmul.f32 %v269, %v275
  %279 = vrot.lane.b32.xlu0 %v277, 32
  %v280 = vpop.permute.xlu0 %279
  %v282 = vadd.f32 %v272, %v280
  %v283 = vtanh.pop %v282
  %285 = vrot.lane.b32.xlu0 %v283, 64
  %v286 = vpop.permute.xlu0 %285
  %v288 = vmul.f32 %v269, %v286
  %290 = vrot.lane.b32.xlu0 %v288, 32
  %v291 = vpop.permute.xlu0 %290
  %v292 = vsel %vm189, %v291, 0
  %294 = vmatprep.subr.mxu0 0.0
  %295 = vmatpush1.msra.mxu0 %v44
  %296 = vmatprep.subr.mxu0 0.0
  %297 = vmatpush1.msra.mxu0 %v45
  %298 = vmatprep.subr.mxu0 0.0
  %299 = vmatpush1.msra.mxu0 %v46
  %300 = vmatprep.subr.mxu0 0.0
  %301 = vmatpush1.msra.mxu0 %v47
  %302 = vmatprep.subr.mxu0 0.0
  %303 = vmatpush1.msra.mxu0 0.0
  %304 = vmatprep.subr.mxu0 0.0
  %305 = vmatpush1.msra.mxu0 0.0
  %306 = vmatprep.subr.mxu0 0.0
  %307 = vmatpush1.msra.mxu0 0.0
  %308 = vmatprep.subr.mxu0 0.0
  %309 = vmatpush1.msra.mxu0 0.0
  %310 = vmatprep.subr.mxu0 0.0
  %311 = vmatpush1.msra.mxu0 0.0
  %312 = vmatprep.subr.mxu0 0.0
  %313 = vmatpush1.msra.mxu0 0.0
  %314 = vmatprep.subr.mxu0 0.0
  %315 = vmatpush1.msra.mxu0 0.0
  %316 = vmatprep.subr.mxu0 0.0
  %317 = vmatpush1.msra.mxu0 0.0
  %318 = vmatprep.subr.mxu0 0.0
  %319 = vmatpush1.msra.mxu0 0.0
  %320 = vmatprep.subr.mxu0 0.0
  %321 = vmatpush1.msra.mxu0 0.0
  %322 = vmatprep.subr.mxu0 0.0
  %323 = vmatpush1.msra.mxu0 0.0
  %324 = vmatprep.subr.mxu0 0.0
  %325 = vmatpush1.msra.mxu0 0.0
  %326 = vmatprep.subr.mxu0 0.0
  %327 = vmatpush1.msra.mxu0 0.0
  %328 = vmatprep.subr.mxu0 0.0
  %329 = vmatpush1.msra.mxu0 0.0
  %330 = vmatprep.subr.mxu0 0.0
  %331 = vmatpush1.msra.mxu0 0.0
  %332 = vmatprep.subr.mxu0 0.0
  %333 = vmatpush1.msra.mxu0 0.0
  %334 = vmatprep.subr.mxu0 0.0
  %335 = vmatpush1.msra.mxu0 0.0
  %336 = vmatprep.subr.mxu0 0.0
  %337 = vmatpush1.msra.mxu0 0.0
  %338 = vmatprep.subr.mxu0 0.0
  %339 = vmatpush1.msra.mxu0 0.0
  %340 = vmatprep.subr.mxu0 0.0
  %341 = vmatpush1.msra.mxu0 0.0
  %342 = vmatprep.subr.mxu0 0.0
  %343 = vmatpush1.msra.mxu0 0.0
  %344 = vmatprep.subr.mxu0 0.0
  %345 = vmatpush1.msra.mxu0 0.0
  %346 = vmatprep.subr.mxu0 0.0
  %347 = vmatpush1.msra.mxu0 0.0
  %348 = vmatprep.subr.mxu0 0.0
  %349 = vmatpush1.msra.mxu0 0.0
  %350 = vmatprep.subr.mxu0 0.0
  %351 = vmatpush1.msra.mxu0 0.0
  %352 = vmatprep.subr.mxu0 0.0
  %353 = vmatpush1.msra.mxu0 0.0
  %354 = vmatprep.subr.mxu0 0.0
  %355 = vmatpush1.msra.mxu0 0.0
  %356 = vmatprep.subr.mxu0 0.0
  %357 = vmatpush1.msra.mxu0 0.0
  %358 = vmatprep.mubr.f32.mxu0 0.0
  %359 = vmatmul.mubr.f32.gmra.mrb[0].mxu0 %v292
  %v360 = vpop.f32.mrb[0].mxu0
  %v361 = vadd.f32 0.0, %v360
  %v362 = vpop.f32.mrb[0].mxu0
  %363 = vdwg.mxu0
  %v364 = vadd.f32 %v156, %v361
  %v365 = vxor.u32 %v364, 2147483648
  %v366 = vmul.f32 %v365, 1.442695
  %v367 = vpow.pop %v366
  %v368 = vadd.f32 %v367, 1.0
  %v369 = vrcp.pop %v368
  %v370 = vmul.f32 1.0, %v369
  %v371 = vmul.f32 %v370, 2.0
  %v372 = vsub.f32 %v371, 1.0
  %v373 = vmul.f32 %v370, %v282
  %375 = vrot.lane.b32.xlu0 %v372, 64
  %v376 = vpop.permute.xlu0 %375
  %v378 = vmul.f32 %v370, %v376
  %380 = vrot.lane.b32.xlu0 %v378, 32
  %v381 = vpop.permute.xlu0 %380
  %v383 = vadd.f32 %v373, %v381
  %v384 = vtanh.pop %v383
  %386 = vrot.lane.b32.xlu0 %v384, 64
  %v387 = vpop.permute.xlu0 %386
  %v389 = vmul.f32 %v370, %v387
  %391 = vrot.lane.b32.xlu0 %v389, 32
  %v392 = vpop.permute.xlu0 %391
  %v393 = vsel %vm189, %v392, 0
  %395 = vmatprep.subr.mxu0 0.0
  %396 = vmatpush1.msra.mxu0 %v44
  %397 = vmatprep.subr.mxu0 0.0
  %398 = vmatpush1.msra.mxu0 %v45
  %399 = vmatprep.subr.mxu0 0.0
  %400 = vmatpush1.msra.mxu0 %v46
  %401 = vmatprep.subr.mxu0 0.0
  %402 = vmatpush1.msra.mxu0 %v47
  %403 = vmatprep.subr.mxu0 0.0
  %404 = vmatpush1.msra.mxu0 0.0
  %405 = vmatprep.subr.mxu0 0.0
  %406 = vmatpush1.msra.mxu0 0.0
  %407 = vmatprep.subr.mxu0 0.0
  %408 = vmatpush1.msra.mxu0 0.0
  %409 = vmatprep.subr.mxu0 0.0
  %410 = vmatpush1.msra.mxu0 0.0
  %411 = vmatprep.subr.mxu0 0.0
  %412 = vmatpush1.msra.mxu0 0.0
  %413 = vmatprep.subr.mxu0 0.0
  %414 = vmatpush1.msra.mxu0 0.0
  %415 = vmatprep.subr.mxu0 0.0
  %416 = vmatpush1.msra.mxu0 0.0
  %417 = vmatprep.subr.mxu0 0.0
  %418 = vmatpush1.msra.mxu0 0.0
  %419 = vmatprep.subr.mxu0 0.0
  %420 = vmatpush1.msra.mxu0 0.0
  %421 = vmatprep.subr.mxu0 0.0
  %422 = vmatpush1.msra.mxu0 0.0
  %423 = vmatprep.subr.mxu0 0.0
  %424 = vmatpush1.msra.mxu0 0.0
  %425 = vmatprep.subr.mxu0 0.0
  %426 = vmatpush1.msra.mxu0 0.0
  %427 = vmatprep.subr.mxu0 0.0
  %428 = vmatpush1.msra.mxu0 0.0
  %429 = vmatprep.subr.mxu0 0.0
  %430 = vmatpush1.msra.mxu0 0.0
  %431 = vmatprep.subr.mxu0 0.0
  %432 = vmatpush1.msra.mxu0 0.0
  %433 = vmatprep.subr.mxu0 0.0
  %434 = vmatpush1.msra.mxu0 0.0
  %435 = vmatprep.subr.mxu0 0.0
  %436 = vmatpush1.msra.mxu0 0.0
  %437 = vmatprep.subr.mxu0 0.0
  %438 = vmatpush1.msra.mxu0 0.0
  %439 = vmatprep.subr.mxu0 0.0
  %440 = vmatpush1.msra.mxu0 0.0
  %441 = vmatprep.subr.mxu0 0.0
  %442 = vmatpush1.msra.mxu0 0.0
  %443 = vmatprep.subr.mxu0 0.0
  %444 = vmatpush1.msra.mxu0 0.0
  %445 = vmatprep.subr.mxu0 0.0
  %446 = vmatpush1.msra.mxu0 0.0
  %447 = vmatprep.subr.mxu0 0.0
  %448 = vmatpush1.msra.mxu0 0.0
  %449 = vmatprep.subr.mxu0 0.0
  %450 = vmatpush1.msra.mxu0 0.0
  %451 = vmatprep.subr.mxu0 0.0
  %452 = vmatpush1.msra.mxu0 0.0
  %453 = vmatprep.subr.mxu0 0.0
  %454 = vmatpush1.msra.mxu0 0.0
  %455 = vmatprep.subr.mxu0 0.0
  %456 = vmatpush1.msra.mxu0 0.0
  %457 = vmatprep.subr.mxu0 0.0
  %458 = vmatpush1.msra.mxu0 0.0
  %459 = vmatprep.mubr.f32.mxu0 0.0
  %460 = vmatmul.mubr.f32.gmra.mrb[0].mxu0 %v393
  %v461 = vpop.f32.mrb[0].mxu0
  %v462 = vadd.f32 0.0, %v461
  %v463 = vpop.f32.mrb[0].mxu0
  %464 = vdwg.mxu0
  %v465 = vadd.f32 %v161, %v462
  %v466 = vxor.u32 %v465, 2147483648
  %v467 = vmul.f32 %v466, 1.442695
  %v468 = vpow.pop %v467
  %v469 = vadd.f32 %v468, 1.0
  %v470 = vrcp.pop %v469
  %v471 = vmul.f32 1.0, %v470
  %v472 = vmul.f32 %v471, 2.0
  %v473 = vsub.f32 %v472, 1.0
  %v474 = vmul.f32 %v471, %v383
  %476 = vrot.lane.b32.xlu0 %v473, 64
  %v477 = vpop.permute.xlu0 %476
  %v479 = vmul.f32 %v471, %v477
  %481 = vrot.lane.b32.xlu0 %v479, 32
  %v482 = vpop.permute.xlu0 %481
  %v484 = vadd.f32 %v474, %v482
  %v485 = vtanh.pop %v484
  %487 = vrot.lane.b32.xlu0 %v485, 64
  %v488 = vpop.permute.xlu0 %487
  %v490 = vmul.f32 %v471, %v488
  %492 = vrot.lane.b32.xlu0 %v490, 32
  %v493 = vpop.permute.xlu0 %492
  %v494 = vsel %vm189, %v493, 0
  %496 = vmatprep.subr.mxu0 0.0
  %497 = vmatpush1.msra.mxu0 %v44
  %498 = vmatprep.subr.mxu0 0.0
  %499 = vmatpush1.msra.mxu0 %v45
  %500 = vmatprep.subr.mxu0 0.0
  %501 = vmatpush1.msra.mxu0 %v46
  %502 = vmatprep.subr.mxu0 0.0
  %503 = vmatpush1.msra.mxu0 %v47
  %504 = vmatprep.subr.mxu0 0.0
  %505 = vmatpush1.msra.mxu0 0.0
  %506 = vmatprep.subr.mxu0 0.0
  %507 = vmatpush1.msra.mxu0 0.0
  %508 = vmatprep.subr.mxu0 0.0
  %509 = vmatpush1.msra.mxu0 0.0
  %510 = vmatprep.subr.mxu0 0.0
  %511 = vmatpush1.msra.mxu0 0.0
  %512 = vmatprep.subr.mxu0 0.0
  %513 = vmatpush1.msra.mxu0 0.0
  %514 = vmatprep.subr.mxu0 0.0
  %515 = vmatpush1.msra.mxu0 0.0
  %516 = vmatprep.subr.mxu0 0.0
  %517 = vmatpush1.msra.mxu0 0.0
  %518 = vmatprep.subr.mxu0 0.0
  %519 = vmatpush1.msra.mxu0 0.0
  %520 = vmatprep.subr.mxu0 0.0
  %521 = vmatpush1.msra.mxu0 0.0
  %522 = vmatprep.subr.mxu0 0.0
  %523 = vmatpush1.msra.mxu0 0.0
  %524 = vmatprep.subr.mxu0 0.0
  %525 = vmatpush1.msra.mxu0 0.0
  %526 = vmatprep.subr.mxu0 0.0
  %527 = vmatpush1.msra.mxu0 0.0
  %528 = vmatprep.subr.mxu0 0.0
  %529 = vmatpush1.msra.mxu0 0.0
  %530 = vmatprep.subr.mxu0 0.0
  %531 = vmatpush1.msra.mxu0 0.0
  %532 = vmatprep.subr.mxu0 0.0
  %533 = vmatpush1.msra.mxu0 0.0
  %534 = vmatprep.subr.mxu0 0.0
  %535 = vmatpush1.msra.mxu0 0.0
  %536 = vmatprep.subr.mxu0 0.0
  %537 = vmatpush1.msra.mxu0 0.0
  %538 = vmatprep.subr.mxu0 0.0
  %539 = vmatpush1.msra.mxu0 0.0
  %540 = vmatprep.subr.mxu0 0.0
  %541 = vmatpush1.msra.mxu0 0.0
  %542 = vmatprep.subr.mxu0 0.0
  %543 = vmatpush1.msra.mxu0 0.0
  %544 = vmatprep.subr.mxu0 0.0
  %545 = vmatpush1.msra.mxu0 0.0
  %546 = vmatprep.subr.mxu0 0.0
  %547 = vmatpush1.msra.mxu0 0.0
  %548 = vmatprep.subr.mxu0 0.0
  %549 = vmatpush1.msra.mxu0 0.0
  %550 = vmatprep.subr.mxu0 0.0
  %551 = vmatpush1.msra.mxu0 0.0
  %552 = vmatprep.subr.mxu0 0.0
  %553 = vmatpush1.msra.mxu0 0.0
  %554 = vmatprep.subr.mxu0 0.0
  %555 = vmatpush1.msra.mxu0 0.0
  %556 = vmatprep.subr.mxu0 0.0
  %557 = vmatpush1.msra.mxu0 0.0
  %558 = vmatprep.subr.mxu0 0.0
  %559 = vmatpush1.msra.mxu0 0.0
  %560 = vmatprep.mubr.f32.mxu0 0.0
  %561 = vmatmul.mubr.f32.gmra.mrb[0].mxu0 %v494
  %v562 = vpop.f32.mrb[0].mxu0
  %v563 = vadd.f32 0.0, %v562
  %v564 = vpop.f32.mrb[0].mxu0
  %565 = vdwg.mxu0
  %v566 = vadd.f32 %v166, %v563
  %v567 = vxor.u32 %v566, 2147483648
  %v568 = vmul.f32 %v567, 1.442695
  %v569 = vpow.pop %v568
  %v570 = vadd.f32 %v569, 1.0
  %v571 = vrcp.pop %v570
  %v572 = vmul.f32 1.0, %v571
  %v573 = vmul.f32 %v572, 2.0
  %v574 = vsub.f32 %v573, 1.0
  %v575 = vmul.f32 %v572, %v484
  %577 = vrot.lane.b32.xlu0 %v574, 64
  %v578 = vpop.permute.xlu0 %577
  %v580 = vmul.f32 %v572, %v578
  %582 = vrot.lane.b32.xlu0 %v580, 32
  %v583 = vpop.permute.xlu0 %582
  %v585 = vadd.f32 %v575, %v583
  %v586 = vtanh.pop %v585
  %588 = vrot.lane.b32.xlu0 %v586, 64
  %v589 = vpop.permute.xlu0 %588
  %v591 = vmul.f32 %v572, %v589
  %593 = vrot.lane.b32.xlu0 %v591, 32
  %v594 = vpop.permute.xlu0 %593
  %v595 = vsel %vm189, %v594, 0
  %597 = vmatprep.subr.mxu0 0.0
  %598 = vmatpush1.msra.mxu0 %v44
  %599 = vmatprep.subr.mxu0 0.0
  %600 = vmatpush1.msra.mxu0 %v45
  %601 = vmatprep.subr.mxu0 0.0
  %602 = vmatpush1.msra.mxu0 %v46
  %603 = vmatprep.subr.mxu0 0.0
  %604 = vmatpush1.msra.mxu0 %v47
  %605 = vmatprep.subr.mxu0 0.0
  %606 = vmatpush1.msra.mxu0 0.0
  %607 = vmatprep.subr.mxu0 0.0
  %608 = vmatpush1.msra.mxu0 0.0
  %609 = vmatprep.subr.mxu0 0.0
  %610 = vmatpush1.msra.mxu0 0.0
  %611 = vmatprep.subr.mxu0 0.0
  %612 = vmatpush1.msra.mxu0 0.0
  %613 = vmatprep.subr.mxu0 0.0
  %614 = vmatpush1.msra.mxu0 0.0
  %615 = vmatprep.subr.mxu0 0.0
  %616 = vmatpush1.msra.mxu0 0.0
  %617 = vmatprep.subr.mxu0 0.0
  %618 = vmatpush1.msra.mxu0 0.0
  %619 = vmatprep.subr.mxu0 0.0
  %620 = vmatpush1.msra.mxu0 0.0
  %621 = vmatprep.subr.mxu0 0.0
  %622 = vmatpush1.msra.mxu0 0.0
  %623 = vmatprep.subr.mxu0 0.0
  %624 = vmatpush1.msra.mxu0 0.0
  %625 = vmatprep.subr.mxu0 0.0
  %626 = vmatpush1.msra.mxu0 0.0
  %627 = vmatprep.subr.mxu0 0.0
  %628 = vmatpush1.msra.mxu0 0.0
  %629 = vmatprep.subr.mxu0 0.0
  %630 = vmatpush1.msra.mxu0 0.0
  %631 = vmatprep.subr.mxu0 0.0
  %632 = vmatpush1.msra.mxu0 0.0
  %633 = vmatprep.subr.mxu0 0.0
  %634 = vmatpush1.msra.mxu0 0.0
  %635 = vmatprep.subr.mxu0 0.0
  %636 = vmatpush1.msra.mxu0 0.0
  %637 = vmatprep.subr.mxu0 0.0
  %638 = vmatpush1.msra.mxu0 0.0
  %639 = vmatprep.subr.mxu0 0.0
  %640 = vmatpush1.msra.mxu0 0.0
  %641 = vmatprep.subr.mxu0 0.0
  %642 = vmatpush1.msra.mxu0 0.0
  %643 = vmatprep.subr.mxu0 0.0
  %644 = vmatpush1.msra.mxu0 0.0
  %645 = vmatprep.subr.mxu0 0.0
  %646 = vmatpush1.msra.mxu0 0.0
  %647 = vmatprep.subr.mxu0 0.0
  %648 = vmatpush1.msra.mxu0 0.0
  %649 = vmatprep.subr.mxu0 0.0
  %650 = vmatpush1.msra.mxu0 0.0
  %651 = vmatprep.subr.mxu0 0.0
  %652 = vmatpush1.msra.mxu0 0.0
  %653 = vmatprep.subr.mxu0 0.0
  %654 = vmatpush1.msra.mxu0 0.0
  %655 = vmatprep.subr.mxu0 0.0
  %656 = vmatpush1.msra.mxu0 0.0
  %657 = vmatprep.subr.mxu0 0.0
  %658 = vmatpush1.msra.mxu0 0.0
  %659 = vmatprep.subr.mxu0 0.0
  %660 = vmatpush1.msra.mxu0 0.0
  %661 = vmatprep.mubr.f32.mxu0 0.0
  %662 = vmatmul.mubr.f32.gmra.mrb[0].mxu0 %v595
  %v663 = vpop.f32.mrb[0].mxu0
  %v664 = vadd.f32 0.0, %v663
  %v665 = vpop.f32.mrb[0].mxu0
  %666 = vdwg.mxu0
  %v667 = vadd.f32 %v171, %v664
  %v668 = vxor.u32 %v667, 2147483648
  %v669 = vmul.f32 %v668, 1.442695
  %v670 = vpow.pop %v669
  %v671 = vadd.f32 %v670, 1.0
  %v672 = vrcp.pop %v671
  %v673 = vmul.f32 1.0, %v672
  %v674 = vmul.f32 %v673, 2.0
  %v675 = vsub.f32 %v674, 1.0
  %v676 = vmul.f32 %v673, %v585
  %678 = vrot.lane.b32.xlu0 %v675, 64
  %v679 = vpop.permute.xlu0 %678
  %v681 = vmul.f32 %v673, %v679
  %683 = vrot.lane.b32.xlu0 %v681, 32
  %v684 = vpop.permute.xlu0 %683
  %v686 = vadd.f32 %v676, %v684
  %v687 = vtanh.pop %v686
  %689 = vrot.lane.b32.xlu0 %v687, 64
  %v690 = vpop.permute.xlu0 %689
  %v692 = vmul.f32 %v673, %v690
  %694 = vrot.lane.b32.xlu0 %v692, 32
  %v695 = vpop.permute.xlu0 %694
  %v696 = vsel %vm189, %v695, 0
  %698 = vmatprep.subr.mxu0 0.0
  %699 = vmatpush1.msra.mxu0 %v44
  %700 = vmatprep.subr.mxu0 0.0
  %701 = vmatpush1.msra.mxu0 %v45
  %702 = vmatprep.subr.mxu0 0.0
  %703 = vmatpush1.msra.mxu0 %v46
  %704 = vmatprep.subr.mxu0 0.0
  %705 = vmatpush1.msra.mxu0 %v47
  %706 = vmatprep.subr.mxu0 0.0
  %707 = vmatpush1.msra.mxu0 0.0
  %708 = vmatprep.subr.mxu0 0.0
  %709 = vmatpush1.msra.mxu0 0.0
  %710 = vmatprep.subr.mxu0 0.0
  %711 = vmatpush1.msra.mxu0 0.0
  %712 = vmatprep.subr.mxu0 0.0
  %713 = vmatpush1.msra.mxu0 0.0
  %714 = vmatprep.subr.mxu0 0.0
  %715 = vmatpush1.msra.mxu0 0.0
  %716 = vmatprep.subr.mxu0 0.0
  %717 = vmatpush1.msra.mxu0 0.0
  %718 = vmatprep.subr.mxu0 0.0
  %719 = vmatpush1.msra.mxu0 0.0
  %720 = vmatprep.subr.mxu0 0.0
  %721 = vmatpush1.msra.mxu0 0.0
  %722 = vmatprep.subr.mxu0 0.0
  %723 = vmatpush1.msra.mxu0 0.0
  %724 = vmatprep.subr.mxu0 0.0
  %725 = vmatpush1.msra.mxu0 0.0
  %726 = vmatprep.subr.mxu0 0.0
  %727 = vmatpush1.msra.mxu0 0.0
  %728 = vmatprep.subr.mxu0 0.0
  %729 = vmatpush1.msra.mxu0 0.0
  %730 = vmatprep.subr.mxu0 0.0
  %731 = vmatpush1.msra.mxu0 0.0
  %732 = vmatprep.subr.mxu0 0.0
  %733 = vmatpush1.msra.mxu0 0.0
  %734 = vmatprep.subr.mxu0 0.0
  %735 = vmatpush1.msra.mxu0 0.0
  %736 = vmatprep.subr.mxu0 0.0
  %737 = vmatpush1.msra.mxu0 0.0
  %738 = vmatprep.subr.mxu0 0.0
  %739 = vmatpush1.msra.mxu0 0.0
  %740 = vmatprep.subr.mxu0 0.0
  %741 = vmatpush1.msra.mxu0 0.0
  %742 = vmatprep.subr.mxu0 0.0
  %743 = vmatpush1.msra.mxu0 0.0
  %744 = vmatprep.subr.mxu0 0.0
  %745 = vmatpush1.msra.mxu0 0.0
  %746 = vmatprep.subr.mxu0 0.0
  %747 = vmatpush1.msra.mxu0 0.0
  %748 = vmatprep.subr.mxu0 0.0
  %749 = vmatpush1.msra.mxu0 0.0
  %750 = vmatprep.subr.mxu0 0.0
  %751 = vmatpush1.msra.mxu0 0.0
  %752 = vmatprep.subr.mxu0 0.0
  %753 = vmatpush1.msra.mxu0 0.0
  %754 = vmatprep.subr.mxu0 0.0
  %755 = vmatpush1.msra.mxu0 0.0
  %756 = vmatprep.subr.mxu0 0.0
  %757 = vmatpush1.msra.mxu0 0.0
  %758 = vmatprep.subr.mxu0 0.0
  %759 = vmatpush1.msra.mxu0 0.0
  %760 = vmatprep.subr.mxu0 0.0
  %761 = vmatpush1.msra.mxu0 0.0
  %762 = vmatprep.mubr.f32.mxu0 0.0
  %763 = vmatmul.mubr.f32.gmra.mrb[0].mxu0 %v696
  %v764 = vpop.f32.mrb[0].mxu0
  %v765 = vadd.f32 0.0, %v764
  %v766 = vpop.f32.mrb[0].mxu0
  %767 = vdwg.mxu0
  %v768 = vadd.f32 %v176, %v765
  %v769 = vxor.u32 %v768, 2147483648
  %v770 = vmul.f32 %v769, 1.442695
  %v771 = vpow.pop %v770
  %v772 = vadd.f32 %v771, 1.0
  %v773 = vrcp.pop %v772
  %v774 = vmul.f32 1.0, %v773
  %v775 = vmul.f32 %v774, 2.0
  %v776 = vsub.f32 %v775, 1.0
  %v777 = vmul.f32 %v774, %v686
  %779 = vrot.lane.b32.xlu0 %v776, 64
  %v780 = vpop.permute.xlu0 %779
  %v782 = vmul.f32 %v774, %v780
  %784 = vrot.lane.b32.xlu0 %v782, 32
  %v785 = vpop.permute.xlu0 %784
  %v787 = vadd.f32 %v777, %v785
  %v788 = vtanh.pop %v787
  %790 = vrot.lane.b32.xlu0 %v788, 64
  %v791 = vpop.permute.xlu0 %790
  %v793 = vmul.f32 %v774, %v791
  %795 = vrot.lane.b32.xlu0 %v793, 32
  %v796 = vpop.permute.xlu0 %795
  %v797 = vsel %vm189, %v796, 0
  %799 = vmatprep.subr.mxu0 0.0
  %800 = vmatpush1.msra.mxu0 %v44
  %801 = vmatprep.subr.mxu0 0.0
  %802 = vmatpush1.msra.mxu0 %v45
  %803 = vmatprep.subr.mxu0 0.0
  %804 = vmatpush1.msra.mxu0 %v46
  %805 = vmatprep.subr.mxu0 0.0
  %806 = vmatpush1.msra.mxu0 %v47
  %807 = vmatprep.subr.mxu0 0.0
  %808 = vmatpush1.msra.mxu0 0.0
  %809 = vmatprep.subr.mxu0 0.0
  %810 = vmatpush1.msra.mxu0 0.0
  %811 = vmatprep.subr.mxu0 0.0
  %812 = vmatpush1.msra.mxu0 0.0
  %813 = vmatprep.subr.mxu0 0.0
  %814 = vmatpush1.msra.mxu0 0.0
  %815 = vmatprep.subr.mxu0 0.0
  %816 = vmatpush1.msra.mxu0 0.0
  %817 = vmatprep.subr.mxu0 0.0
  %818 = vmatpush1.msra.mxu0 0.0
  %819 = vmatprep.subr.mxu0 0.0
  %820 = vmatpush1.msra.mxu0 0.0
  %821 = vmatprep.subr.mxu0 0.0
  %822 = vmatpush1.msra.mxu0 0.0
  %823 = vmatprep.subr.mxu0 0.0
  %824 = vmatpush1.msra.mxu0 0.0
  %825 = vmatprep.subr.mxu0 0.0
  %826 = vmatpush1.msra.mxu0 0.0
  %827 = vmatprep.subr.mxu0 0.0
  %828 = vmatpush1.msra.mxu0 0.0
  %829 = vmatprep.subr.mxu0 0.0
  %830 = vmatpush1.msra.mxu0 0.0
  %831 = vmatprep.subr.mxu0 0.0
  %832 = vmatpush1.msra.mxu0 0.0
  %833 = vmatprep.subr.mxu0 0.0
  %834 = vmatpush1.msra.mxu0 0.0
  %835 = vmatprep.subr.mxu0 0.0
  %836 = vmatpush1.msra.mxu0 0.0
  %837 = vmatprep.subr.mxu0 0.0
  %838 = vmatpush1.msra.mxu0 0.0
  %839 = vmatprep.subr.mxu0 0.0
  %840 = vmatpush1.msra.mxu0 0.0
  %841 = vmatprep.subr.mxu0 0.0
  %842 = vmatpush1.msra.mxu0 0.0
  %843 = vmatprep.subr.mxu0 0.0
  %844 = vmatpush1.msra.mxu0 0.0
  %845 = vmatprep.subr.mxu0 0.0
  %846 = vmatpush1.msra.mxu0 0.0
  %847 = vmatprep.subr.mxu0 0.0
  %848 = vmatpush1.msra.mxu0 0.0
  %849 = vmatprep.subr.mxu0 0.0
  %850 = vmatpush1.msra.mxu0 0.0
  %851 = vmatprep.subr.mxu0 0.0
  %852 = vmatpush1.msra.mxu0 0.0
  %853 = vmatprep.subr.mxu0 0.0
  %854 = vmatpush1.msra.mxu0 0.0
  %855 = vmatprep.subr.mxu0 0.0
  %856 = vmatpush1.msra.mxu0 0.0
  %857 = vmatprep.subr.mxu0 0.0
  %858 = vmatpush1.msra.mxu0 0.0
  %859 = vmatprep.subr.mxu0 0.0
  %860 = vmatpush1.msra.mxu0 0.0
  %861 = vmatprep.subr.mxu0 0.0
  %862 = vmatpush1.msra.mxu0 0.0
  %863 = vmatprep.mubr.f32.mxu0 0.0
  %864 = vmatmul.mubr.f32.gmra.mrb[0].mxu0 %v797
  %v865 = vpop.f32.mrb[0].mxu0
  %v866 = vadd.f32 0.0, %v865
  %v867 = vpop.f32.mrb[0].mxu0
  %868 = vdwg.mxu0
  %v869 = vadd.f32 %v181, %v866
  %v870 = vxor.u32 %v869, 2147483648
  %v871 = vmul.f32 %v870, 1.442695
  %v872 = vpow.pop %v871
  %v873 = vadd.f32 %v872, 1.0
  %v874 = vrcp.pop %v873
  %v875 = vmul.f32 1.0, %v874
  %v876 = vmul.f32 %v875, 2.0
  %v877 = vsub.f32 %v876, 1.0
  %v878 = vmul.f32 %v875, %v787
  %880 = vrot.lane.b32.xlu0 %v877, 64
  %v881 = vpop.permute.xlu0 %880
  %v883 = vmul.f32 %v875, %v881
  %885 = vrot.lane.b32.xlu0 %v883, 32
  %v886 = vpop.permute.xlu0 %885
  %v888 = vadd.f32 %v878, %v886
  %v889 = vtanh.pop %v888
  %891 = vrot.lane.b32.xlu0 %v889, 64
  %v892 = vpop.permute.xlu0 %891
  %v894 = vmul.f32 %v875, %v892
  %896 = vrot.lane.b32.xlu0 %v894, 32
  %v897 = vpop.permute.xlu0 %896
  %v898 = vsel %vm189, %v897, 0
  %900 = vmatprep.subr.mxu0 0.0
  %901 = vmatpush1.msra.mxu0 %v44
  %902 = vmatprep.subr.mxu0 0.0
  %903 = vmatpush1.msra.mxu0 %v45
  %904 = vmatprep.subr.mxu0 0.0
  %905 = vmatpush1.msra.mxu0 %v46
  %906 = vmatprep.subr.mxu0 0.0
  %907 = vmatpush1.msra.mxu0 %v47
  %908 = vmatprep.subr.mxu0 0.0
  %909 = vmatpush1.msra.mxu0 0.0
  %910 = vmatprep.subr.mxu0 0.0
  %911 = vmatpush1.msra.mxu0 0.0
  %912 = vmatprep.subr.mxu0 0.0
  %913 = vmatpush1.msra.mxu0 0.0
  %914 = vmatprep.subr.mxu0 0.0
  %915 = vmatpush1.msra.mxu0 0.0
  %916 = vmatprep.subr.mxu0 0.0
  %917 = vmatpush1.msra.mxu0 0.0
  %918 = vmatprep.subr.mxu0 0.0
  %919 = vmatpush1.msra.mxu0 0.0
  %920 = vmatprep.subr.mxu0 0.0
  %921 = vmatpush1.msra.mxu0 0.0
  %922 = vmatprep.subr.mxu0 0.0
  %923 = vmatpush1.msra.mxu0 0.0
  %924 = vmatprep.subr.mxu0 0.0
  %925 = vmatpush1.msra.mxu0 0.0
  %926 = vmatprep.subr.mxu0 0.0
  %927 = vmatpush1.msra.mxu0 0.0
  %928 = vmatprep.subr.mxu0 0.0
  %929 = vmatpush1.msra.mxu0 0.0
  %930 = vmatprep.subr.mxu0 0.0
  %931 = vmatpush1.msra.mxu0 0.0
  %932 = vmatprep.subr.mxu0 0.0
  %933 = vmatpush1.msra.mxu0 0.0
  %934 = vmatprep.subr.mxu0 0.0
  %935 = vmatpush1.msra.mxu0 0.0
  %936 = vmatprep.subr.mxu0 0.0
  %937 = vmatpush1.msra.mxu0 0.0
  %938 = vmatprep.subr.mxu0 0.0
  %939 = vmatpush1.msra.mxu0 0.0
  %940 = vmatprep.subr.mxu0 0.0
  %941 = vmatpush1.msra.mxu0 0.0
  %942 = vmatprep.subr.mxu0 0.0
  %943 = vmatpush1.msra.mxu0 0.0
  %944 = vmatprep.subr.mxu0 0.0
  %945 = vmatpush1.msra.mxu0 0.0
  %946 = vmatprep.subr.mxu0 0.0
  %947 = vmatpush1.msra.mxu0 0.0
  %948 = vmatprep.subr.mxu0 0.0
  %949 = vmatpush1.msra.mxu0 0.0
  %950 = vmatprep.subr.mxu0 0.0
  %951 = vmatpush1.msra.mxu0 0.0
  %952 = vmatprep.subr.mxu0 0.0
  %953 = vmatpush1.msra.mxu0 0.0
  %954 = vmatprep.subr.mxu0 0.0
  %955 = vmatpush1.msra.mxu0 0.0
  %956 = vmatprep.subr.mxu0 0.0
  %957 = vmatpush1.msra.mxu0 0.0
  %958 = vmatprep.subr.mxu0 0.0
  %959 = vmatpush1.msra.mxu0 0.0
  %960 = vmatprep.subr.mxu0 0.0
  %961 = vmatpush1.msra.mxu0 0.0
  %962 = vmatprep.subr.mxu0 0.0
  %963 = vmatpush1.msra.mxu0 0.0
  %964 = vmatprep.mubr.f32.mxu0 0.0
  %965 = vmatmul.mubr.f32.gmra.mrb[0].mxu0 %v898
  %v966 = vpop.f32.mrb[0].mxu0
  %v967 = vadd.f32 0.0, %v966
  %v968 = vpop.f32.mrb[0].mxu0
  %969 = vdwg.mxu0
  %v970 = vadd.f32 %v186, %v967
  %v971 = vxor.u32 %v970, 2147483648
  %v972 = vmul.f32 %v971, 1.442695
  %v973 = vpow.pop %v972
  %v974 = vadd.f32 %v973, 1.0
  %v975 = vrcp.pop %v974
  %v976 = vmul.f32 1.0, %v975
  %v977 = vmul.f32 %v976, 2.0
  %v978 = vsub.f32 %v977, 1.0
  %v979 = vmul.f32 %v976, %v888
  %981 = vrot.lane.b32.xlu0 %v978, 64
  %v982 = vpop.permute.xlu0 %981
  %v984 = vmul.f32 %v976, %v982
  %986 = vrot.lane.b32.xlu0 %v984, 32
  %v987 = vpop.permute.xlu0 %986
  %v989 = vadd.f32 %v979, %v987
  %v990 = vtanh.pop %v989
  %992 = vrot.lane.b32.xlu0 %v990, 64
  %v993 = vpop.permute.xlu0 %992
  %v995 = vmul.f32 %v976, %v993
  %v996 = vld [vmem:[%s4] sm:$0xff]
  %v997 = vld [vmem:[%s4 + $0x8] sm:$0xff]
  %v998 = vld [vmem:[%s4 + $0x10] sm:$0xff]
  %v999 = vld [vmem:[%s4 + $0x18] sm:$0xff]
  %v1000 = vld [vmem:[%s5] sm:$0xff]
  %v1001 = vld [vmem:[%s5 + $0x8] sm:$0xff]
  %v1002 = vld [vmem:[%s5 + $0x10] sm:$0xff]
  %v1003 = vld [vmem:[%s5 + $0x18] sm:$0xff]
  %v1004 = vld [vmem:[%s6] sm:$0x1]
  %v1006 = vlaneseq
  %v1007 = vshrl.u32 %v1006, 7
  %v1008 = vsub.s32 0, %v1007
  %v1009 = vrot.slane %v1004, %v1008
  %1012 = vrot.lane.b32.xlu0 %v995, 32
  %v1013 = vpop.permute.xlu0 %1012
  %v1014 = vsel %vm189, %v1013, 0
  %1016 = vmatprep.subr.mxu0 0.0
  %1017 = vmatpush1.msra.mxu0 %v996
  %1018 = vmatprep.subr.mxu0 0.0
  %1019 = vmatpush1.msra.mxu0 %v997
  %1020 = vmatprep.subr.mxu0 0.0
  %1021 = vmatpush1.msra.mxu0 %v998
  %1022 = vmatprep.subr.mxu0 0.0
  %1023 = vmatpush1.msra.mxu0 %v999
  %1024 = vmatprep.subr.mxu0 0.0
  %1025 = vmatpush1.msra.mxu0 0.0
  %1026 = vmatprep.subr.mxu0 0.0
  %1027 = vmatpush1.msra.mxu0 0.0
  %1028 = vmatprep.subr.mxu0 0.0
  %1029 = vmatpush1.msra.mxu0 0.0
  %1030 = vmatprep.subr.mxu0 0.0
  %1031 = vmatpush1.msra.mxu0 0.0
  %1032 = vmatprep.subr.mxu0 0.0
  %1033 = vmatpush1.msra.mxu0 0.0
  %1034 = vmatprep.subr.mxu0 0.0
  %1035 = vmatpush1.msra.mxu0 0.0
  %1036 = vmatprep.subr.mxu0 0.0
  %1037 = vmatpush1.msra.mxu0 0.0
  %1038 = vmatprep.subr.mxu0 0.0
  %1039 = vmatpush1.msra.mxu0 0.0
  %1040 = vmatprep.subr.mxu0 0.0
  %1041 = vmatpush1.msra.mxu0 0.0
  %1042 = vmatprep.subr.mxu0 0.0
  %1043 = vmatpush1.msra.mxu0 0.0
  %1044 = vmatprep.subr.mxu0 0.0
  %1045 = vmatpush1.msra.mxu0 0.0
  %1046 = vmatprep.subr.mxu0 0.0
  %1047 = vmatpush1.msra.mxu0 0.0
  %1048 = vmatprep.subr.mxu0 0.0
  %1049 = vmatpush1.msra.mxu0 0.0
  %1050 = vmatprep.subr.mxu0 0.0
  %1051 = vmatpush1.msra.mxu0 0.0
  %1052 = vmatprep.subr.mxu0 0.0
  %1053 = vmatpush1.msra.mxu0 0.0
  %1054 = vmatprep.subr.mxu0 0.0
  %1055 = vmatpush1.msra.mxu0 0.0
  %1056 = vmatprep.subr.mxu0 0.0
  %1057 = vmatpush1.msra.mxu0 0.0
  %1058 = vmatprep.subr.mxu0 0.0
  %1059 = vmatpush1.msra.mxu0 0.0
  %1060 = vmatprep.subr.mxu0 0.0
  %1061 = vmatpush1.msra.mxu0 0.0
  %1062 = vmatprep.subr.mxu0 0.0
  %1063 = vmatpush1.msra.mxu0 0.0
  %1064 = vmatprep.subr.mxu0 0.0
  %1065 = vmatpush1.msra.mxu0 0.0
  %1066 = vmatprep.subr.mxu0 0.0
  %1067 = vmatpush1.msra.mxu0 0.0
  %1068 = vmatprep.subr.mxu0 0.0
  %1069 = vmatpush1.msra.mxu0 0.0
  %1070 = vmatprep.subr.mxu0 0.0
  %1071 = vmatpush1.msra.mxu0 0.0
  %1072 = vmatprep.subr.mxu0 0.0
  %1073 = vmatpush1.msra.mxu0 0.0
  %1074 = vmatprep.subr.mxu0 0.0
  %1075 = vmatpush1.msra.mxu0 0.0
  %1076 = vmatprep.subr.mxu0 0.0
  %1077 = vmatpush1.msra.mxu0 0.0
  %1078 = vmatprep.subr.mxu0 0.0
  %1079 = vmatpush1.msra.mxu0 0.0
  %1080 = vmatprep.mubr.f32.mxu0 0.0
  %1081 = vmatmul.mubr.f32.gmra.mrb[0].mxu0 %v292
  %v1082 = vpop.f32.mrb[0].mxu0
  %v1083 = vadd.f32 %v1009, %v1082
  %v1084 = vpop.f32.mrb[0].mxu0
  %1085 = vmatprep.mubr.f32.mxu0 0.0
  %1086 = vmatmul.mubr.f32.gmra.mrb[0].mxu0 %v393
  %v1087 = vpop.f32.mrb[0].mxu0
  %v1088 = vadd.f32 %v1009, %v1087
  %v1089 = vpop.f32.mrb[0].mxu0
  %1090 = vmatprep.mubr.f32.mxu0 0.0
  %1091 = vmatmul.mubr.f32.gmra.mrb[0].mxu0 %v494
  %v1092 = vpop.f32.mrb[0].mxu0
  %v1093 = vadd.f32 %v1009, %v1092
  %v1094 = vpop.f32.mrb[0].mxu0
  %1095 = vmatprep.mubr.f32.mxu0 0.0
  %1096 = vmatmul.mubr.f32.gmra.mrb[0].mxu0 %v595
  %v1097 = vpop.f32.mrb[0].mxu0
  %v1098 = vadd.f32 %v1009, %v1097
  %v1099 = vpop.f32.mrb[0].mxu0
  %1100 = vmatprep.mubr.f32.mxu0 0.0
  %1101 = vmatmul.mubr.f32.gmra.mrb[0].mxu0 %v696
  %v1102 = vpop.f32.mrb[0].mxu0
  %v1103 = vadd.f32 %v1009, %v1102
  %v1104 = vpop.f32.mrb[0].mxu0
  %1105 = vmatprep.mubr.f32.mxu0 0.0
  %1106 = vmatmul.mubr.f32.gmra.mrb[0].mxu0 %v797
  %v1107 = vpop.f32.mrb[0].mxu0
  %v1108 = vadd.f32 %v1009, %v1107
  %v1109 = vpop.f32.mrb[0].mxu0
  %1110 = vmatprep.mubr.f32.mxu0 0.0
  %1111 = vmatmul.mubr.f32.gmra.mrb[0].mxu0 %v898
  %v1112 = vpop.f32.mrb[0].mxu0
  %v1113 = vadd.f32 %v1009, %v1112
  %v1114 = vpop.f32.mrb[0].mxu0
  %1115 = vmatprep.mubr.f32.mxu0 0.0
  %1116 = vmatmul.mubr.f32.gmra.mrb[0].mxu0 %v1014
  %v1117 = vpop.f32.mrb[0].mxu0
  %v1118 = vadd.f32 %v1009, %v1117
  %v1119 = vpop.f32.mrb[0].mxu0
  %1120 = vdwg.mxu0
  %1121 = vmatprep.subr.mxu0 0.0
  %1122 = vmatpush1.msra.mxu0 %v1000
  %1123 = vmatprep.subr.mxu0 0.0
  %1124 = vmatpush1.msra.mxu0 %v1001
  %1125 = vmatprep.subr.mxu0 0.0
  %1126 = vmatpush1.msra.mxu0 %v1002
  %1127 = vmatprep.subr.mxu0 0.0
  %1128 = vmatpush1.msra.mxu0 %v1003
  %1129 = vmatprep.subr.mxu0 0.0
  %1130 = vmatpush1.msra.mxu0 0.0
  %1131 = vmatprep.subr.mxu0 0.0
  %1132 = vmatpush1.msra.mxu0 0.0
  %1133 = vmatprep.subr.mxu0 0.0
  %1134 = vmatpush1.msra.mxu0 0.0
  %1135 = vmatprep.subr.mxu0 0.0
  %1136 = vmatpush1.msra.mxu0 0.0
  %1137 = vmatprep.subr.mxu0 0.0
  %1138 = vmatpush1.msra.mxu0 0.0
  %1139 = vmatprep.subr.mxu0 0.0
  %1140 = vmatpush1.msra.mxu0 0.0
  %1141 = vmatprep.subr.mxu0 0.0
  %1142 = vmatpush1.msra.mxu0 0.0
  %1143 = vmatprep.subr.mxu0 0.0
  %1144 = vmatpush1.msra.mxu0 0.0
  %1145 = vmatprep.subr.mxu0 0.0
  %1146 = vmatpush1.msra.mxu0 0.0
  %1147 = vmatprep.subr.mxu0 0.0
  %1148 = vmatpush1.msra.mxu0 0.0
  %1149 = vmatprep.subr.mxu0 0.0
  %1150 = vmatpush1.msra.mxu0 0.0
  %1151 = vmatprep.subr.mxu0 0.0
  %1152 = vmatpush1.msra.mxu0 0.0
  %1153 = vmatprep.subr.mxu0 0.0
  %1154 = vmatpush1.msra.mxu0 0.0
  %1155 = vmatprep.subr.mxu0 0.0
  %1156 = vmatpush1.msra.mxu0 0.0
  %1157 = vmatprep.subr.mxu0 0.0
  %1158 = vmatpush1.msra.mxu0 0.0
  %1159 = vmatprep.subr.mxu0 0.0
  %1160 = vmatpush1.msra.mxu0 0.0
  %1161 = vmatprep.subr.mxu0 0.0
  %1162 = vmatpush1.msra.mxu0 0.0
  %1163 = vmatprep.subr.mxu0 0.0
  %1164 = vmatpush1.msra.mxu0 0.0
  %1165 = vmatprep.subr.mxu0 0.0
  %1166 = vmatpush1.msra.mxu0 0.0
  %1167 = vmatprep.subr.mxu0 0.0
  %1168 = vmatpush1.msra.mxu0 0.0
  %1169 = vmatprep.subr.mxu0 0.0
  %1170 = vmatpush1.msra.mxu0 0.0
  %1171 = vmatprep.subr.mxu0 0.0
  %1172 = vmatpush1.msra.mxu0 0.0
  %1173 = vmatprep.subr.mxu0 0.0
  %1174 = vmatpush1.msra.mxu0 0.0
  %1175 = vmatprep.subr.mxu0 0.0
  %1176 = vmatpush1.msra.mxu0 0.0
  %1177 = vmatprep.subr.mxu0 0.0
  %1178 = vmatpush1.msra.mxu0 0.0
  %1179 = vmatprep.subr.mxu0 0.0
  %1180 = vmatpush1.msra.mxu0 0.0
  %1181 = vmatprep.subr.mxu0 0.0
  %1182 = vmatpush1.msra.mxu0 0.0
  %1183 = vmatprep.subr.mxu0 0.0
  %1184 = vmatpush1.msra.mxu0 0.0
  %1185 = vmatprep.mubr.f32.mxu0 0.0
  %1186 = vmatmul.mubr.f32.gmra.mrb[0].mxu0 %v191
  %v1187 = vpop.f32.mrb[0].mxu0
  %v1188 = vadd.f32 0.0, %v1187
  %v1189 = vpop.f32.mrb[0].mxu0
  %1190 = vdwg.mxu0
  %v1191 = vadd.f32 %v1083, %v1188
  %v1192 = vxor.u32 %v1191, 2147483648
  %v1193 = vmul.f32 %v1192, 1.442695
  %v1194 = vpow.pop %v1193
  %v1195 = vadd.f32 %v1194, 1.0
  %v1196 = vrcp.pop %v1195
  %v1197 = vmul.f32 1.0, %v1196
  %v1198 = vmul.f32 %v1197, 2.0
  %v1199 = vsub.f32 %v1198, 1.0
  %v1200 = vmul.f32 %v1197, 0.0
  %1202 = vrot.lane.b32.xlu0 %v1199, 64
  %v1203 = vpop.permute.xlu0 %1202
  %v1205 = vmul.f32 %v1197, %v1203
  %1207 = vrot.lane.b32.xlu0 %v1205, 32
  %v1208 = vpop.permute.xlu0 %1207
  %v1210 = vadd.f32 %v1200, %v1208
  %v1211 = vtanh.pop %v1210
  %1213 = vrot.lane.b32.xlu0 %v1211, 64
  %v1214 = vpop.permute.xlu0 %1213
  %v1216 = vmul.f32 %v1197, %v1214
  %1218 = vrot.lane.b32.xlu0 %v1216, 32
  %v1219 = vpop.permute.xlu0 %1218
  %v1220 = vsel %vm189, %v1219, 0
  %1222 = vmatprep.subr.mxu0 0.0
  %1223 = vmatpush1.msra.mxu0 %v1000
  %1224 = vmatprep.subr.mxu0 0.0
  %1225 = vmatpush1.msra.mxu0 %v1001
  %1226 = vmatprep.subr.mxu0 0.0
  %1227 = vmatpush1.msra.mxu0 %v1002
  %1228 = vmatprep.subr.mxu0 0.0
  %1229 = vmatpush1.msra.mxu0 %v1003
  %1230 = vmatprep.subr.mxu0 0.0
  %1231 = vmatpush1.msra.mxu0 0.0
  %1232 = vmatprep.subr.mxu0 0.0
  %1233 = vmatpush1.msra.mxu0 0.0
  %1234 = vmatprep.subr.mxu0 0.0
  %1235 = vmatpush1.msra.mxu0 0.0
  %1236 = vmatprep.subr.mxu0 0.0
  %1237 = vmatpush1.msra.mxu0 0.0
  %1238 = vmatprep.subr.mxu0 0.0
  %1239 = vmatpush1.msra.mxu0 0.0
  %1240 = vmatprep.subr.mxu0 0.0
  %1241 = vmatpush1.msra.mxu0 0.0
  %1242 = vmatprep.subr.mxu0 0.0
  %1243 = vmatpush1.msra.mxu0 0.0
  %1244 = vmatprep.subr.mxu0 0.0
  %1245 = vmatpush1.msra.mxu0 0.0
  %1246 = vmatprep.subr.mxu0 0.0
  %1247 = vmatpush1.msra.mxu0 0.0
  %1248 = vmatprep.subr.mxu0 0.0
  %1249 = vmatpush1.msra.mxu0 0.0
  %1250 = vmatprep.subr.mxu0 0.0
  %1251 = vmatpush1.msra.mxu0 0.0
  %1252 = vmatprep.subr.mxu0 0.0
  %1253 = vmatpush1.msra.mxu0 0.0
  %1254 = vmatprep.subr.mxu0 0.0
  %1255 = vmatpush1.msra.mxu0 0.0
  %1256 = vmatprep.subr.mxu0 0.0
  %1257 = vmatpush1.msra.mxu0 0.0
  %1258 = vmatprep.subr.mxu0 0.0
  %1259 = vmatpush1.msra.mxu0 0.0
  %1260 = vmatprep.subr.mxu0 0.0
  %1261 = vmatpush1.msra.mxu0 0.0
  %1262 = vmatprep.subr.mxu0 0.0
  %1263 = vmatpush1.msra.mxu0 0.0
  %1264 = vmatprep.subr.mxu0 0.0
  %1265 = vmatpush1.msra.mxu0 0.0
  %1266 = vmatprep.subr.mxu0 0.0
  %1267 = vmatpush1.msra.mxu0 0.0
  %1268 = vmatprep.subr.mxu0 0.0
  %1269 = vmatpush1.msra.mxu0 0.0
  %1270 = vmatprep.subr.mxu0 0.0
  %1271 = vmatpush1.msra.mxu0 0.0
  %1272 = vmatprep.subr.mxu0 0.0
  %1273 = vmatpush1.msra.mxu0 0.0
  %1274 = vmatprep.subr.mxu0 0.0
  %1275 = vmatpush1.msra.mxu0 0.0
  %1276 = vmatprep.subr.mxu0 0.0
  %1277 = vmatpush1.msra.mxu0 0.0
  %1278 = vmatprep.subr.mxu0 0.0
  %1279 = vmatpush1.msra.mxu0 0.0
  %1280 = vmatprep.subr.mxu0 0.0
  %1281 = vmatpush1.msra.mxu0 0.0
  %1282 = vmatprep.subr.mxu0 0.0
  %1283 = vmatpush1.msra.mxu0 0.0
  %1284 = vmatprep.subr.mxu0 0.0
  %1285 = vmatpush1.msra.mxu0 0.0
  %1286 = vmatprep.mubr.f32.mxu0 0.0
  %1287 = vmatmul.mubr.f32.gmra.mrb[0].mxu0 %v1220
  %v1288 = vpop.f32.mrb[0].mxu0
  %v1289 = vadd.f32 0.0, %v1288
  %v1290 = vpop.f32.mrb[0].mxu0
  %1291 = vdwg.mxu0
  %v1292 = vadd.f32 %v1088, %v1289
  %v1293 = vxor.u32 %v1292, 2147483648
  %v1294 = vmul.f32 %v1293, 1.442695
  %v1295 = vpow.pop %v1294
  %v1296 = vadd.f32 %v1295, 1.0
  %v1297 = vrcp.pop %v1296
  %v1298 = vmul.f32 1.0, %v1297
  %v1299 = vmul.f32 %v1298, 2.0
  %v1300 = vsub.f32 %v1299, 1.0
  %v1301 = vmul.f32 %v1298, %v1210
  %1303 = vrot.lane.b32.xlu0 %v1300, 64
  %v1304 = vpop.permute.xlu0 %1303
  %v1306 = vmul.f32 %v1298, %v1304
  %1308 = vrot.lane.b32.xlu0 %v1306, 32
  %v1309 = vpop.permute.xlu0 %1308
  %v1311 = vadd.f32 %v1301, %v1309
  %v1312 = vtanh.pop %v1311
  %1314 = vrot.lane.b32.xlu0 %v1312, 64
  %v1315 = vpop.permute.xlu0 %1314
  %v1317 = vmul.f32 %v1298, %v1315
  %1319 = vrot.lane.b32.xlu0 %v1317, 32
  %v1320 = vpop.permute.xlu0 %1319
  %v1321 = vsel %vm189, %v1320, 0
  %1323 = vmatprep.subr.mxu0 0.0
  %1324 = vmatpush1.msra.mxu0 %v1000
  %1325 = vmatprep.subr.mxu0 0.0
  %1326 = vmatpush1.msra.mxu0 %v1001
  %1327 = vmatprep.subr.mxu0 0.0
  %1328 = vmatpush1.msra.mxu0 %v1002
  %1329 = vmatprep.subr.mxu0 0.0
  %1330 = vmatpush1.msra.mxu0 %v1003
  %1331 = vmatprep.subr.mxu0 0.0
  %1332 = vmatpush1.msra.mxu0 0.0
  %1333 = vmatprep.subr.mxu0 0.0
  %1334 = vmatpush1.msra.mxu0 0.0
  %1335 = vmatprep.subr.mxu0 0.0
  %1336 = vmatpush1.msra.mxu0 0.0
  %1337 = vmatprep.subr.mxu0 0.0
  %1338 = vmatpush1.msra.mxu0 0.0
  %1339 = vmatprep.subr.mxu0 0.0
  %1340 = vmatpush1.msra.mxu0 0.0
  %1341 = vmatprep.subr.mxu0 0.0
  %1342 = vmatpush1.msra.mxu0 0.0
  %1343 = vmatprep.subr.mxu0 0.0
  %1344 = vmatpush1.msra.mxu0 0.0
  %1345 = vmatprep.subr.mxu0 0.0
  %1346 = vmatpush1.msra.mxu0 0.0
  %1347 = vmatprep.subr.mxu0 0.0
  %1348 = vmatpush1.msra.mxu0 0.0
  %1349 = vmatprep.subr.mxu0 0.0
  %1350 = vmatpush1.msra.mxu0 0.0
  %1351 = vmatprep.subr.mxu0 0.0
  %1352 = vmatpush1.msra.mxu0 0.0
  %1353 = vmatprep.subr.mxu0 0.0
  %1354 = vmatpush1.msra.mxu0 0.0
  %1355 = vmatprep.subr.mxu0 0.0
  %1356 = vmatpush1.msra.mxu0 0.0
  %1357 = vmatprep.subr.mxu0 0.0
  %1358 = vmatpush1.msra.mxu0 0.0
  %1359 = vmatprep.subr.mxu0 0.0
  %1360 = vmatpush1.msra.mxu0 0.0
  %1361 = vmatprep.subr.mxu0 0.0
  %1362 = vmatpush1.msra.mxu0 0.0
  %1363 = vmatprep.subr.mxu0 0.0
  %1364 = vmatpush1.msra.mxu0 0.0
  %1365 = vmatprep.subr.mxu0 0.0
  %1366 = vmatpush1.msra.mxu0 0.0
  %1367 = vmatprep.subr.mxu0 0.0
  %1368 = vmatpush1.msra.mxu0 0.0
  %1369 = vmatprep.subr.mxu0 0.0
  %1370 = vmatpush1.msra.mxu0 0.0
  %1371 = vmatprep.subr.mxu0 0.0
  %1372 = vmatpush1.msra.mxu0 0.0
  %1373 = vmatprep.subr.mxu0 0.0
  %1374 = vmatpush1.msra.mxu0 0.0
  %1375 = vmatprep.subr.mxu0 0.0
  %1376 = vmatpush1.msra.mxu0 0.0
  %1377 = vmatprep.subr.mxu0 0.0
  %1378 = vmatpush1.msra.mxu0 0.0
  %1379 = vmatprep.subr.mxu0 0.0
  %1380 = vmatpush1.msra.mxu0 0.0
  %1381 = vmatprep.subr.mxu0 0.0
  %1382 = vmatpush1.msra.mxu0 0.0
  %1383 = vmatprep.subr.mxu0 0.0
  %1384 = vmatpush1.msra.mxu0 0.0
  %1385 = vmatprep.subr.mxu0 0.0
  %1386 = vmatpush1.msra.mxu0 0.0
  %1387 = vmatprep.mubr.f32.mxu0 0.0
  %1388 = vmatmul.mubr.f32.gmra.mrb[0].mxu0 %v1321
  %v1389 = vpop.f32.mrb[0].mxu0
  %v1390 = vadd.f32 0.0, %v1389
  %v1391 = vpop.f32.mrb[0].mxu0
  %1392 = vdwg.mxu0
  %v1393 = vadd.f32 %v1093, %v1390
  %v1394 = vxor.u32 %v1393, 2147483648
  %v1395 = vmul.f32 %v1394, 1.442695
  %v1396 = vpow.pop %v1395
  %v1397 = vadd.f32 %v1396, 1.0
  %v1398 = vrcp.pop %v1397
  %v1399 = vmul.f32 1.0, %v1398
  %v1400 = vmul.f32 %v1399, 2.0
  %v1401 = vsub.f32 %v1400, 1.0
  %v1402 = vmul.f32 %v1399, %v1311
  %1404 = vrot.lane.b32.xlu0 %v1401, 64
  %v1405 = vpop.permute.xlu0 %1404
  %v1407 = vmul.f32 %v1399, %v1405
  %1409 = vrot.lane.b32.xlu0 %v1407, 32
  %v1410 = vpop.permute.xlu0 %1409
  %v1412 = vadd.f32 %v1402, %v1410
  %v1413 = vtanh.pop %v1412
  %1415 = vrot.lane.b32.xlu0 %v1413, 64
  %v1416 = vpop.permute.xlu0 %1415
  %v1418 = vmul.f32 %v1399, %v1416
  %1420 = vrot.lane.b32.xlu0 %v1418, 32
  %v1421 = vpop.permute.xlu0 %1420
  %v1422 = vsel %vm189, %v1421, 0
  %1424 = vmatprep.subr.mxu0 0.0
  %1425 = vmatpush1.msra.mxu0 %v1000
  %1426 = vmatprep.subr.mxu0 0.0
  %1427 = vmatpush1.msra.mxu0 %v1001
  %1428 = vmatprep.subr.mxu0 0.0
  %1429 = vmatpush1.msra.mxu0 %v1002
  %1430 = vmatprep.subr.mxu0 0.0
  %1431 = vmatpush1.msra.mxu0 %v1003
  %1432 = vmatprep.subr.mxu0 0.0
  %1433 = vmatpush1.msra.mxu0 0.0
  %1434 = vmatprep.subr.mxu0 0.0
  %1435 = vmatpush1.msra.mxu0 0.0
  %1436 = vmatprep.subr.mxu0 0.0
  %1437 = vmatpush1.msra.mxu0 0.0
  %1438 = vmatprep.subr.mxu0 0.0
  %1439 = vmatpush1.msra.mxu0 0.0
  %1440 = vmatprep.subr.mxu0 0.0
  %1441 = vmatpush1.msra.mxu0 0.0
  %1442 = vmatprep.subr.mxu0 0.0
  %1443 = vmatpush1.msra.mxu0 0.0
  %1444 = vmatprep.subr.mxu0 0.0
  %1445 = vmatpush1.msra.mxu0 0.0
  %1446 = vmatprep.subr.mxu0 0.0
  %1447 = vmatpush1.msra.mxu0 0.0
  %1448 = vmatprep.subr.mxu0 0.0
  %1449 = vmatpush1.msra.mxu0 0.0
  %1450 = vmatprep.subr.mxu0 0.0
  %1451 = vmatpush1.msra.mxu0 0.0
  %1452 = vmatprep.subr.mxu0 0.0
  %1453 = vmatpush1.msra.mxu0 0.0
  %1454 = vmatprep.subr.mxu0 0.0
  %1455 = vmatpush1.msra.mxu0 0.0
  %1456 = vmatprep.subr.mxu0 0.0
  %1457 = vmatpush1.msra.mxu0 0.0
  %1458 = vmatprep.subr.mxu0 0.0
  %1459 = vmatpush1.msra.mxu0 0.0
  %1460 = vmatprep.subr.mxu0 0.0
  %1461 = vmatpush1.msra.mxu0 0.0
  %1462 = vmatprep.subr.mxu0 0.0
  %1463 = vmatpush1.msra.mxu0 0.0
  %1464 = vmatprep.subr.mxu0 0.0
  %1465 = vmatpush1.msra.mxu0 0.0
  %1466 = vmatprep.subr.mxu0 0.0
  %1467 = vmatpush1.msra.mxu0 0.0
  %1468 = vmatprep.subr.mxu0 0.0
  %1469 = vmatpush1.msra.mxu0 0.0
  %1470 = vmatprep.subr.mxu0 0.0
  %1471 = vmatpush1.msra.mxu0 0.0
  %1472 = vmatprep.subr.mxu0 0.0
  %1473 = vmatpush1.msra.mxu0 0.0
  %1474 = vmatprep.subr.mxu0 0.0
  %1475 = vmatpush1.msra.mxu0 0.0
  %1476 = vmatprep.subr.mxu0 0.0
  %1477 = vmatpush1.msra.mxu0 0.0
  %1478 = vmatprep.subr.mxu0 0.0
  %1479 = vmatpush1.msra.mxu0 0.0
  %1480 = vmatprep.subr.mxu0 0.0
  %1481 = vmatpush1.msra.mxu0 0.0
  %1482 = vmatprep.subr.mxu0 0.0
  %1483 = vmatpush1.msra.mxu0 0.0
  %1484 = vmatprep.subr.mxu0 0.0
  %1485 = vmatpush1.msra.mxu0 0.0
  %1486 = vmatprep.subr.mxu0 0.0
  %1487 = vmatpush1.msra.mxu0 0.0
  %1488 = vmatprep.mubr.f32.mxu0 0.0
  %1489 = vmatmul.mubr.f32.gmra.mrb[0].mxu0 %v1422
  %v1490 = vpop.f32.mrb[0].mxu0
  %v1491 = vadd.f32 0.0, %v1490
  %v1492 = vpop.f32.mrb[0].mxu0
  %1493 = vdwg.mxu0
  %v1494 = vadd.f32 %v1098, %v1491
  %v1495 = vxor.u32 %v1494, 2147483648
  %v1496 = vmul.f32 %v1495, 1.442695
  %v1497 = vpow.pop %v1496
  %v1498 = vadd.f32 %v1497, 1.0
  %v1499 = vrcp.pop %v1498
  %v1500 = vmul.f32 1.0, %v1499
  %v1501 = vmul.f32 %v1500, 2.0
  %v1502 = vsub.f32 %v1501, 1.0
  %v1503 = vmul.f32 %v1500, %v1412
  %1505 = vrot.lane.b32.xlu0 %v1502, 64
  %v1506 = vpop.permute.xlu0 %1505
  %v1508 = vmul.f32 %v1500, %v1506
  %1510 = vrot.lane.b32.xlu0 %v1508, 32
  %v1511 = vpop.permute.xlu0 %1510
  %v1513 = vadd.f32 %v1503, %v1511
  %v1514 = vtanh.pop %v1513
  %1516 = vrot.lane.b32.xlu0 %v1514, 64
  %v1517 = vpop.permute.xlu0 %1516
  %v1519 = vmul.f32 %v1500, %v1517
  %1521 = vrot.lane.b32.xlu0 %v1519, 32
  %v1522 = vpop.permute.xlu0 %1521
  %v1523 = vsel %vm189, %v1522, 0
  %1525 = vmatprep.subr.mxu0 0.0
  %1526 = vmatpush1.msra.mxu0 %v1000
  %1527 = vmatprep.subr.mxu0 0.0
  %1528 = vmatpush1.msra.mxu0 %v1001
  %1529 = vmatprep.subr.mxu0 0.0
  %1530 = vmatpush1.msra.mxu0 %v1002
  %1531 = vmatprep.subr.mxu0 0.0
  %1532 = vmatpush1.msra.mxu0 %v1003
  %1533 = vmatprep.subr.mxu0 0.0
  %1534 = vmatpush1.msra.mxu0 0.0
  %1535 = vmatprep.subr.mxu0 0.0
  %1536 = vmatpush1.msra.mxu0 0.0
  %1537 = vmatprep.subr.mxu0 0.0
  %1538 = vmatpush1.msra.mxu0 0.0
  %1539 = vmatprep.subr.mxu0 0.0
  %1540 = vmatpush1.msra.mxu0 0.0
  %1541 = vmatprep.subr.mxu0 0.0
  %1542 = vmatpush1.msra.mxu0 0.0
  %1543 = vmatprep.subr.mxu0 0.0
  %1544 = vmatpush1.msra.mxu0 0.0
  %1545 = vmatprep.subr.mxu0 0.0
  %1546 = vmatpush1.msra.mxu0 0.0
  %1547 = vmatprep.subr.mxu0 0.0
  %1548 = vmatpush1.msra.mxu0 0.0
  %1549 = vmatprep.subr.mxu0 0.0
  %1550 = vmatpush1.msra.mxu0 0.0
  %1551 = vmatprep.subr.mxu0 0.0
  %1552 = vmatpush1.msra.mxu0 0.0
  %1553 = vmatprep.subr.mxu0 0.0
  %1554 = vmatpush1.msra.mxu0 0.0
  %1555 = vmatprep.subr.mxu0 0.0
  %1556 = vmatpush1.msra.mxu0 0.0
  %1557 = vmatprep.subr.mxu0 0.0
  %1558 = vmatpush1.msra.mxu0 0.0
  %1559 = vmatprep.subr.mxu0 0.0
  %1560 = vmatpush1.msra.mxu0 0.0
  %1561 = vmatprep.subr.mxu0 0.0
  %1562 = vmatpush1.msra.mxu0 0.0
  %1563 = vmatprep.subr.mxu0 0.0
  %1564 = vmatpush1.msra.mxu0 0.0
  %1565 = vmatprep.subr.mxu0 0.0
  %1566 = vmatpush1.msra.mxu0 0.0
  %1567 = vmatprep.subr.mxu0 0.0
  %1568 = vmatpush1.msra.mxu0 0.0
  %1569 = vmatprep.subr.mxu0 0.0
  %1570 = vmatpush1.msra.mxu0 0.0
  %1571 = vmatprep.subr.mxu0 0.0
  %1572 = vmatpush1.msra.mxu0 0.0
  %1573 = vmatprep.subr.mxu0 0.0
  %1574 = vmatpush1.msra.mxu0 0.0
  %1575 = vmatprep.subr.mxu0 0.0
  %1576 = vmatpush1.msra.mxu0 0.0
  %1577 = vmatprep.subr.mxu0 0.0
  %1578 = vmatpush1.msra.mxu0 0.0
  %1579 = vmatprep.subr.mxu0 0.0
  %1580 = vmatpush1.msra.mxu0 0.0
  %1581 = vmatprep.subr.mxu0 0.0
  %1582 = vmatpush1.msra.mxu0 0.0
  %1583 = vmatprep.subr.mxu0 0.0
  %1584 = vmatpush1.msra.mxu0 0.0
  %1585 = vmatprep.subr.mxu0 0.0
  %1586 = vmatpush1.msra.mxu0 0.0
  %1587 = vmatprep.subr.mxu0 0.0
  %1588 = vmatpush1.msra.mxu0 0.0
  %1589 = vmatprep.mubr.f32.mxu0 0.0
  %1590 = vmatmul.mubr.f32.gmra.mrb[0].mxu0 %v1523
  %v1591 = vpop.f32.mrb[0].mxu0
  %v1592 = vadd.f32 0.0, %v1591
  %v1593 = vpop.f32.mrb[0].mxu0
  %1594 = vdwg.mxu0
  %v1595 = vadd.f32 %v1103, %v1592
  %v1596 = vxor.u32 %v1595, 2147483648
  %v1597 = vmul.f32 %v1596, 1.442695
  %v1598 = vpow.pop %v1597
  %v1599 = vadd.f32 %v1598, 1.0
  %v1600 = vrcp.pop %v1599
  %v1601 = vmul.f32 1.0, %v1600
  %v1602 = vmul.f32 %v1601, 2.0
  %v1603 = vsub.f32 %v1602, 1.0
  %v1604 = vmul.f32 %v1601, %v1513
  %1606 = vrot.lane.b32.xlu0 %v1603, 64
  %v1607 = vpop.permute.xlu0 %1606
  %v1609 = vmul.f32 %v1601, %v1607
  %1611 = vrot.lane.b32.xlu0 %v1609, 32
  %v1612 = vpop.permute.xlu0 %1611
  %v1614 = vadd.f32 %v1604, %v1612
  %v1615 = vtanh.pop %v1614
  %1617 = vrot.lane.b32.xlu0 %v1615, 64
  %v1618 = vpop.permute.xlu0 %1617
  %v1620 = vmul.f32 %v1601, %v1618
  %1622 = vrot.lane.b32.xlu0 %v1620, 32
  %v1623 = vpop.permute.xlu0 %1622
  %v1624 = vsel %vm189, %v1623, 0
  %1626 = vmatprep.subr.mxu0 0.0
  %1627 = vmatpush1.msra.mxu0 %v1000
  %1628 = vmatprep.subr.mxu0 0.0
  %1629 = vmatpush1.msra.mxu0 %v1001
  %1630 = vmatprep.subr.mxu0 0.0
  %1631 = vmatpush1.msra.mxu0 %v1002
  %1632 = vmatprep.subr.mxu0 0.0
  %1633 = vmatpush1.msra.mxu0 %v1003
  %1634 = vmatprep.subr.mxu0 0.0
  %1635 = vmatpush1.msra.mxu0 0.0
  %1636 = vmatprep.subr.mxu0 0.0
  %1637 = vmatpush1.msra.mxu0 0.0
  %1638 = vmatprep.subr.mxu0 0.0
  %1639 = vmatpush1.msra.mxu0 0.0
  %1640 = vmatprep.subr.mxu0 0.0
  %1641 = vmatpush1.msra.mxu0 0.0
  %1642 = vmatprep.subr.mxu0 0.0
  %1643 = vmatpush1.msra.mxu0 0.0
  %1644 = vmatprep.subr.mxu0 0.0
  %1645 = vmatpush1.msra.mxu0 0.0
  %1646 = vmatprep.subr.mxu0 0.0
  %1647 = vmatpush1.msra.mxu0 0.0
  %1648 = vmatprep.subr.mxu0 0.0
  %1649 = vmatpush1.msra.mxu0 0.0
  %1650 = vmatprep.subr.mxu0 0.0
  %1651 = vmatpush1.msra.mxu0 0.0
  %1652 = vmatprep.subr.mxu0 0.0
  %1653 = vmatpush1.msra.mxu0 0.0
  %1654 = vmatprep.subr.mxu0 0.0
  %1655 = vmatpush1.msra.mxu0 0.0
  %1656 = vmatprep.subr.mxu0 0.0
  %1657 = vmatpush1.msra.mxu0 0.0
  %1658 = vmatprep.subr.mxu0 0.0
  %1659 = vmatpush1.msra.mxu0 0.0
  %1660 = vmatprep.subr.mxu0 0.0
  %1661 = vmatpush1.msra.mxu0 0.0
  %1662 = vmatprep.subr.mxu0 0.0
  %1663 = vmatpush1.msra.mxu0 0.0
  %1664 = vmatprep.subr.mxu0 0.0
  %1665 = vmatpush1.msra.mxu0 0.0
  %1666 = vmatprep.subr.mxu0 0.0
  %1667 = vmatpush1.msra.mxu0 0.0
  %1668 = vmatprep.subr.mxu0 0.0
  %1669 = vmatpush1.msra.mxu0 0.0
  %1670 = vmatprep.subr.mxu0 0.0
  %1671 = vmatpush1.msra.mxu0 0.0
  %1672 = vmatprep.subr.mxu0 0.0
  %1673 = vmatpush1.msra.mxu0 0.0
  %1674 = vmatprep.subr.mxu0 0.0
  %1675 = vmatpush1.msra.mxu0 0.0
  %1676 = vmatprep.subr.mxu0 0.0
  %1677 = vmatpush1.msra.mxu0 0.0
  %1678 = vmatprep.subr.mxu0 0.0
  %1679 = vmatpush1.msra.mxu0 0.0
  %1680 = vmatprep.subr.mxu0 0.0
  %1681 = vmatpush1.msra.mxu0 0.0
  %1682 = vmatprep.subr.mxu0 0.0
  %1683 = vmatpush1.msra.mxu0 0.0
  %1684 = vmatprep.subr.mxu0 0.0
  %1685 = vmatpush1.msra.mxu0 0.0
  %1686 = vmatprep.subr.mxu0 0.0
  %1687 = vmatpush1.msra.mxu0 0.0
  %1688 = vmatprep.subr.mxu0 0.0
  %1689 = vmatpush1.msra.mxu0 0.0
  %1690 = vmatprep.mubr.f32.mxu0 0.0
  %1691 = vmatmul.mubr.f32.gmra.mrb[0].mxu0 %v1624
  %v1692 = vpop.f32.mrb[0].mxu0
  %v1693 = vadd.f32 0.0, %v1692
  %v1694 = vpop.f32.mrb[0].mxu0
  %1695 = vdwg.mxu0
  %v1696 = vadd.f32 %v1108, %v1693
  %v1697 = vxor.u32 %v1696, 2147483648
  %v1698 = vmul.f32 %v1697, 1.442695
  %v1699 = vpow.pop %v1698
  %v1700 = vadd.f32 %v1699, 1.0
  %v1701 = vrcp.pop %v1700
  %v1702 = vmul.f32 1.0, %v1701
  %v1703 = vmul.f32 %v1702, 2.0
  %v1704 = vsub.f32 %v1703, 1.0
  %v1705 = vmul.f32 %v1702, %v1614
  %1707 = vrot.lane.b32.xlu0 %v1704, 64
  %v1708 = vpop.permute.xlu0 %1707
  %v1710 = vmul.f32 %v1702, %v1708
  %1712 = vrot.lane.b32.xlu0 %v1710, 32
  %v1713 = vpop.permute.xlu0 %1712
  %v1715 = vadd.f32 %v1705, %v1713
  %v1716 = vtanh.pop %v1715
  %1718 = vrot.lane.b32.xlu0 %v1716, 64
  %v1719 = vpop.permute.xlu0 %1718
  %v1721 = vmul.f32 %v1702, %v1719
  %1723 = vrot.lane.b32.xlu0 %v1721, 32
  %v1724 = vpop.permute.xlu0 %1723
  %v1725 = vsel %vm189, %v1724, 0
  %1727 = vmatprep.subr.mxu0 0.0
  %1728 = vmatpush1.msra.mxu0 %v1000
  %1729 = vmatprep.subr.mxu0 0.0
  %1730 = vmatpush1.msra.mxu0 %v1001
  %1731 = vmatprep.subr.mxu0 0.0
  %1732 = vmatpush1.msra.mxu0 %v1002
  %1733 = vmatprep.subr.mxu0 0.0
  %1734 = vmatpush1.msra.mxu0 %v1003
  %1735 = vmatprep.subr.mxu0 0.0
  %1736 = vmatpush1.msra.mxu0 0.0
  %1737 = vmatprep.subr.mxu0 0.0
  %1738 = vmatpush1.msra.mxu0 0.0
  %1739 = vmatprep.subr.mxu0 0.0
  %1740 = vmatpush1.msra.mxu0 0.0
  %1741 = vmatprep.subr.mxu0 0.0
  %1742 = vmatpush1.msra.mxu0 0.0
  %1743 = vmatprep.subr.mxu0 0.0
  %1744 = vmatpush1.msra.mxu0 0.0
  %1745 = vmatprep.subr.mxu0 0.0
  %1746 = vmatpush1.msra.mxu0 0.0
  %1747 = vmatprep.subr.mxu0 0.0
  %1748 = vmatpush1.msra.mxu0 0.0
  %1749 = vmatprep.subr.mxu0 0.0
  %1750 = vmatpush1.msra.mxu0 0.0
  %1751 = vmatprep.subr.mxu0 0.0
  %1752 = vmatpush1.msra.mxu0 0.0
  %1753 = vmatprep.subr.mxu0 0.0
  %1754 = vmatpush1.msra.mxu0 0.0
  %1755 = vmatprep.subr.mxu0 0.0
  %1756 = vmatpush1.msra.mxu0 0.0
  %1757 = vmatprep.subr.mxu0 0.0
  %1758 = vmatpush1.msra.mxu0 0.0
  %1759 = vmatprep.subr.mxu0 0.0
  %1760 = vmatpush1.msra.mxu0 0.0
  %1761 = vmatprep.subr.mxu0 0.0
  %1762 = vmatpush1.msra.mxu0 0.0
  %1763 = vmatprep.subr.mxu0 0.0
  %1764 = vmatpush1.msra.mxu0 0.0
  %1765 = vmatprep.subr.mxu0 0.0
  %1766 = vmatpush1.msra.mxu0 0.0
  %1767 = vmatprep.subr.mxu0 0.0
  %1768 = vmatpush1.msra.mxu0 0.0
  %1769 = vmatprep.subr.mxu0 0.0
  %1770 = vmatpush1.msra.mxu0 0.0
  %1771 = vmatprep.subr.mxu0 0.0
  %1772 = vmatpush1.msra.mxu0 0.0
  %1773 = vmatprep.subr.mxu0 0.0
  %1774 = vmatpush1.msra.mxu0 0.0
  %1775 = vmatprep.subr.mxu0 0.0
  %1776 = vmatpush1.msra.mxu0 0.0
  %1777 = vmatprep.subr.mxu0 0.0
  %1778 = vmatpush1.msra.mxu0 0.0
  %1779 = vmatprep.subr.mxu0 0.0
  %1780 = vmatpush1.msra.mxu0 0.0
  %1781 = vmatprep.subr.mxu0 0.0
  %1782 = vmatpush1.msra.mxu0 0.0
  %1783 = vmatprep.subr.mxu0 0.0
  %1784 = vmatpush1.msra.mxu0 0.0
  %1785 = vmatprep.subr.mxu0 0.0
  %1786 = vmatpush1.msra.mxu0 0.0
  %1787 = vmatprep.subr.mxu0 0.0
  %1788 = vmatpush1.msra.mxu0 0.0
  %1789 = vmatprep.subr.mxu0 0.0
  %1790 = vmatpush1.msra.mxu0 0.0
  %1791 = vmatprep.mubr.f32.mxu0 0.0
  %1792 = vmatmul.mubr.f32.gmra.mrb[0].mxu0 %v1725
  %v1793 = vpop.f32.mrb[0].mxu0
  %v1794 = vadd.f32 0.0, %v1793
  %v1795 = vpop.f32.mrb[0].mxu0
  %1796 = vdwg.mxu0
  %v1797 = vadd.f32 %v1113, %v1794
  %v1798 = vxor.u32 %v1797, 2147483648
  %v1799 = vmul.f32 %v1798, 1.442695
  %v1800 = vpow.pop %v1799
  %v1801 = vadd.f32 %v1800, 1.0
  %v1802 = vrcp.pop %v1801
  %v1803 = vmul.f32 1.0, %v1802
  %v1804 = vmul.f32 %v1803, 2.0
  %v1805 = vsub.f32 %v1804, 1.0
  %v1806 = vmul.f32 %v1803, %v1715
  %1808 = vrot.lane.b32.xlu0 %v1805, 64
  %v1809 = vpop.permute.xlu0 %1808
  %v1811 = vmul.f32 %v1803, %v1809
  %1813 = vrot.lane.b32.xlu0 %v1811, 32
  %v1814 = vpop.permute.xlu0 %1813
  %v1816 = vadd.f32 %v1806, %v1814
  %v1817 = vtanh.pop %v1816
  %1819 = vrot.lane.b32.xlu0 %v1817, 64
  %v1820 = vpop.permute.xlu0 %1819
  %v1822 = vmul.f32 %v1803, %v1820
  %1824 = vrot.lane.b32.xlu0 %v1822, 32
  %v1825 = vpop.permute.xlu0 %1824
  %v1826 = vsel %vm189, %v1825, 0
  %1828 = vmatprep.subr.mxu0 0.0
  %1829 = vmatpush1.msra.mxu0 %v1000
  %1830 = vmatprep.subr.mxu0 0.0
  %1831 = vmatpush1.msra.mxu0 %v1001
  %1832 = vmatprep.subr.mxu0 0.0
  %1833 = vmatpush1.msra.mxu0 %v1002
  %1834 = vmatprep.subr.mxu0 0.0
  %1835 = vmatpush1.msra.mxu0 %v1003
  %1836 = vmatprep.subr.mxu0 0.0
  %1837 = vmatpush1.msra.mxu0 0.0
  %1838 = vmatprep.subr.mxu0 0.0
  %1839 = vmatpush1.msra.mxu0 0.0
  %1840 = vmatprep.subr.mxu0 0.0
  %1841 = vmatpush1.msra.mxu0 0.0
  %1842 = vmatprep.subr.mxu0 0.0
  %1843 = vmatpush1.msra.mxu0 0.0
  %1844 = vmatprep.subr.mxu0 0.0
  %1845 = vmatpush1.msra.mxu0 0.0
  %1846 = vmatprep.subr.mxu0 0.0
  %1847 = vmatpush1.msra.mxu0 0.0
  %1848 = vmatprep.subr.mxu0 0.0
  %1849 = vmatpush1.msra.mxu0 0.0
  %1850 = vmatprep.subr.mxu0 0.0
  %1851 = vmatpush1.msra.mxu0 0.0
  %1852 = vmatprep.subr.mxu0 0.0
  %1853 = vmatpush1.msra.mxu0 0.0
  %1854 = vmatprep.subr.mxu0 0.0
  %1855 = vmatpush1.msra.mxu0 0.0
  %1856 = vmatprep.subr.mxu0 0.0
  %1857 = vmatpush1.msra.mxu0 0.0
  %1858 = vmatprep.subr.mxu0 0.0
  %1859 = vmatpush1.msra.mxu0 0.0
  %1860 = vmatprep.subr.mxu0 0.0
  %1861 = vmatpush1.msra.mxu0 0.0
  %1862 = vmatprep.subr.mxu0 0.0
  %1863 = vmatpush1.msra.mxu0 0.0
  %1864 = vmatprep.subr.mxu0 0.0
  %1865 = vmatpush1.msra.mxu0 0.0
  %1866 = vmatprep.subr.mxu0 0.0
  %1867 = vmatpush1.msra.mxu0 0.0
  %1868 = vmatprep.subr.mxu0 0.0
  %1869 = vmatpush1.msra.mxu0 0.0
  %1870 = vmatprep.subr.mxu0 0.0
  %1871 = vmatpush1.msra.mxu0 0.0
  %1872 = vmatprep.subr.mxu0 0.0
  %1873 = vmatpush1.msra.mxu0 0.0
  %1874 = vmatprep.subr.mxu0 0.0
  %1875 = vmatpush1.msra.mxu0 0.0
  %1876 = vmatprep.subr.mxu0 0.0
  %1877 = vmatpush1.msra.mxu0 0.0
  %1878 = vmatprep.subr.mxu0 0.0
  %1879 = vmatpush1.msra.mxu0 0.0
  %1880 = vmatprep.subr.mxu0 0.0
  %1881 = vmatpush1.msra.mxu0 0.0
  %1882 = vmatprep.subr.mxu0 0.0
  %1883 = vmatpush1.msra.mxu0 0.0
  %1884 = vmatprep.subr.mxu0 0.0
  %1885 = vmatpush1.msra.mxu0 0.0
  %1886 = vmatprep.subr.mxu0 0.0
  %1887 = vmatpush1.msra.mxu0 0.0
  %1888 = vmatprep.subr.mxu0 0.0
  %1889 = vmatpush1.msra.mxu0 0.0
  %1890 = vmatprep.subr.mxu0 0.0
  %1891 = vmatpush1.msra.mxu0 0.0
  %1892 = vmatprep.mubr.f32.mxu0 0.0
  %1893 = vmatmul.mubr.f32.gmra.mrb[0].mxu0 %v1826
  %v1894 = vpop.f32.mrb[0].mxu0
  %v1895 = vadd.f32 0.0, %v1894
  %v1896 = vpop.f32.mrb[0].mxu0
  %1897 = vdwg.mxu0
  %v1898 = vadd.f32 %v1118, %v1895
  %v1899 = vxor.u32 %v1898, 2147483648
  %v1900 = vmul.f32 %v1899, 1.442695
  %v1901 = vpow.pop %v1900
  %v1902 = vadd.f32 %v1901, 1.0
  %v1903 = vrcp.pop %v1902
  %v1904 = vmul.f32 1.0, %v1903
  %v1905 = vmul.f32 %v1904, 2.0
  %v1906 = vsub.f32 %v1905, 1.0
  %v1907 = vmul.f32 %v1904, %v1816
  %1909 = vrot.lane.b32.xlu0 %v1906, 64
  %v1910 = vpop.permute.xlu0 %1909
  %v1912 = vmul.f32 %v1904, %v1910
  %1914 = vrot.lane.b32.xlu0 %v1912, 32
  %v1915 = vpop.permute.xlu0 %1914
  %v1917 = vadd.f32 %v1907, %v1915
  %v1918 = vtanh.pop %v1917
  %1920 = vrot.lane.b32.xlu0 %v1918, 64
  %v1921 = vpop.permute.xlu0 %1920
  %v1923 = vmul.f32 %v1904, %v1921
  %v1924 = vld [vmem:[%s7] sm:$0xff]
  %v1925 = vld [vmem:[%s7 + $0x8] sm:$0xff]
  %v1926 = vld [vmem:[%s7 + $0x10] sm:$0xff]
  %v1927 = vld [vmem:[%s7 + $0x18] sm:$0xff]
  %v1928 = vld [vmem:[%s8] sm:$0x1]
  %v1930 = vlaneseq
  %v1931 = vshrl.u32 %v1930, 7
  %v1932 = vsub.s32 0, %v1931
  %v1933 = vrot.slane %v1928, %v1932
  %1936 = vrot.lane.b32.xlu0 %v1923, 32
  %v1937 = vpop.permute.xlu0 %1936
  %v1938 = vsel %vm189, %v1937, 0
  %1940 = vmatprep.subr.mxu0 0.0
  %1941 = vmatpush1.msra.mxu0 %v1924
  %1942 = vmatprep.subr.mxu0 0.0
  %1943 = vmatpush1.msra.mxu0 %v1925
  %1944 = vmatprep.subr.mxu0 0.0
  %1945 = vmatpush1.msra.mxu0 %v1926
  %1946 = vmatprep.subr.mxu0 0.0
  %1947 = vmatpush1.msra.mxu0 %v1927
  %1948 = vmatprep.subr.mxu0 0.0
  %1949 = vmatpush1.msra.mxu0 0.0
  %1950 = vmatprep.subr.mxu0 0.0
  %1951 = vmatpush1.msra.mxu0 0.0
  %1952 = vmatprep.subr.mxu0 0.0
  %1953 = vmatpush1.msra.mxu0 0.0
  %1954 = vmatprep.subr.mxu0 0.0
  %1955 = vmatpush1.msra.mxu0 0.0
  %1956 = vmatprep.subr.mxu0 0.0
  %1957 = vmatpush1.msra.mxu0 0.0
  %1958 = vmatprep.subr.mxu0 0.0
  %1959 = vmatpush1.msra.mxu0 0.0
  %1960 = vmatprep.subr.mxu0 0.0
  %1961 = vmatpush1.msra.mxu0 0.0
  %1962 = vmatprep.subr.mxu0 0.0
  %1963 = vmatpush1.msra.mxu0 0.0
  %1964 = vmatprep.subr.mxu0 0.0
  %1965 = vmatpush1.msra.mxu0 0.0
  %1966 = vmatprep.subr.mxu0 0.0
  %1967 = vmatpush1.msra.mxu0 0.0
  %1968 = vmatprep.subr.mxu0 0.0
  %1969 = vmatpush1.msra.mxu0 0.0
  %1970 = vmatprep.subr.mxu0 0.0
  %1971 = vmatpush1.msra.mxu0 0.0
  %1972 = vmatprep.subr.mxu0 0.0
  %1973 = vmatpush1.msra.mxu0 0.0
  %1974 = vmatprep.subr.mxu0 0.0
  %1975 = vmatpush1.msra.mxu0 0.0
  %1976 = vmatprep.subr.mxu0 0.0
  %1977 = vmatpush1.msra.mxu0 0.0
  %1978 = vmatprep.subr.mxu0 0.0
  %1979 = vmatpush1.msra.mxu0 0.0
  %1980 = vmatprep.subr.mxu0 0.0
  %1981 = vmatpush1.msra.mxu0 0.0
  %1982 = vmatprep.subr.mxu0 0.0
  %1983 = vmatpush1.msra.mxu0 0.0
  %1984 = vmatprep.subr.mxu0 0.0
  %1985 = vmatpush1.msra.mxu0 0.0
  %1986 = vmatprep.subr.mxu0 0.0
  %1987 = vmatpush1.msra.mxu0 0.0
  %1988 = vmatprep.subr.mxu0 0.0
  %1989 = vmatpush1.msra.mxu0 0.0
  %1990 = vmatprep.subr.mxu0 0.0
  %1991 = vmatpush1.msra.mxu0 0.0
  %1992 = vmatprep.subr.mxu0 0.0
  %1993 = vmatpush1.msra.mxu0 0.0
  %1994 = vmatprep.subr.mxu0 0.0
  %1995 = vmatpush1.msra.mxu0 0.0
  %1996 = vmatprep.subr.mxu0 0.0
  %1997 = vmatpush1.msra.mxu0 0.0
  %1998 = vmatprep.subr.mxu0 0.0
  %1999 = vmatpush1.msra.mxu0 0.0
  %2000 = vmatprep.subr.mxu0 0.0
  %2001 = vmatpush1.msra.mxu0 0.0
  %2002 = vmatprep.subr.mxu0 0.0
  %2003 = vmatpush1.msra.mxu0 0.0
  %2004 = vmatprep.mubr.f32.mxu0 0.0
  %2005 = vmatmul.mubr.f32.gmra.mrb[0].mxu0 %v1938
  %v2006 = vpop.f32.mrb[0].mxu0
  %v2007 = vadd.f32 %v1933, %v2006
  %v2008 = vpop.f32.mrb[0].mxu0
  %2009 = vdwg.mxu0
  %2010 = vst [vmem:[%s9] sm:$0xff] %v2007
  // Predicated region
  $region38: #{rnn_forward.1} parent=0 // pred_check
    _
  $region39: #{rnn_forward.1} parent=0 // pred_check_branch
    %2012 = sbr.rel (0) target = $region41
  $region40: #{rnn_forward.1} parent=0 // pred_region
    _
  $region41: #{rnn_forward.1} parent=0 // pred_fallthru
    _
  // Predicated region
  $region42: #{rnn_forward.1} parent=0 // pred_check
    _
  $region43: #{rnn_forward.1} parent=0 // pred_check_branch
    %2014 = sbr.rel (0) target = $region45
  $region44: #{rnn_forward.1} parent=0 // pred_region
    _
  $region45: #{rnn_forward.1} parent=0 // pred_fallthru
    _

</llo_original>
